<compile_context>
chip_gen: v5e
topology: v5e:2x2
jax: 0.10.0
libtpu: 0.0.40
codegen_flags: <defaults>
</compile_context>

<pallas_src>
import functools
import math

import jax
import jax.numpy as jnp
import numpy as np
from jax.experimental import pallas as pl
from jax.experimental.pallas import tpu as pltpu


# ----------------------------------------------------------------------------
# Kernel 1: GNN gated propagation cell (GNN.forward), batch-blocked,
#           block-diagonal aggregation, fused gate matmuls.
# ----------------------------------------------------------------------------
def _gnn_kernel(step,
                a_in_ref, a_out_ref, h_ref,
                w_edge_ref, b_edge_ref, b_ah_ref,
                w_ih_ref, b_ih_ref, w_hh_ref, b_hh_ref,
                out_ref):
    M, H = h_ref.shape                  # M = block_b * N

    # Block-diagonal adjacency for this batch block: one big matmul per direction.
    A_in = a_in_ref[0]                  # (M, M)
    A_out = a_out_ref[0]                # (M, M)

    # Hoist every weight / bias load out of the propagation loop.
    w_in_t, w_out_t = w_edge_ref[0], w_edge_ref[1]      # (H, H), pre-transposed
    b_in, b_out = b_edge_ref[0:1], b_edge_ref[1:2]      # (1, H)
    b_iah, b_oah = b_ah_ref[0:1], b_ah_ref[1:2]         # (1, H)
    wih_in_t, wih_out_t = w_ih_ref[0], w_ih_ref[1]      # (H, 3H) per input half
    whh_t = w_hh_ref[...]                               # (H, 3H)
    b_ih = b_ih_ref[...]                                 # (1, 3H)
    b_hh = b_hh_ref[...]                                 # (1, 3H)

    def mm(x, w):
        return jnp.dot(x, w, preferred_element_type=jnp.float32)

    def body(_, h):
        e_in = mm(h, w_in_t) + b_in                      # (M, H)
        e_out = mm(h, w_out_t) + b_out                   # (M, H)
        # Block-diagonal aggregation: single (M,M)@(M,H) MXU push per direction.
        input_in = mm(A_in, e_in) + b_iah                # (M, H)
        input_out = mm(A_out, e_out) + b_oah             # (M, H)

        # Fused gate matmuls: 3 MXU pushes per step (96 output lanes each).
        gi = mm(input_in, wih_in_t) + mm(input_out, wih_out_t) + b_ih   # (M, 3H)
        gh = mm(h, whh_t) + b_hh                                        # (M, 3H)

        rz = jax.nn.sigmoid(gi[:, :2 * H] + gh[:, :2 * H])
        resetgate = rz[:, :H]
        inputgate = rz[:, H:2 * H]
        newgate = jnp.tanh(gi[:, 2 * H:] + resetgate * gh[:, 2 * H:])
        return h - inputgate * (h - newgate)

    out_ref[...] = jax.lax.fori_loop(0, step, body, h_ref[...], unroll=True)


def _prep_gnn_weights(p, H):
    w_edge_t = jnp.stack([p["w_edge_in"].T, p["w_edge_out"].T])        # (2, H, H)
    b_edge = jnp.stack([p["b_edge_in"], p["b_edge_out"]])              # (2, H)
    b_ah = jnp.stack([p["b_iah"], p["b_oah"]])                         # (2, H)
    # w_ih: (3H, 2H); columns [:H] act on input_in, [H:] on input_out.
    w_ih = p["w_ih"]
    w_ih_t = jnp.stack([w_ih[:, :H].T, w_ih[:, H:].T])                 # (2, H, 3H)
    w_hh_t = p["w_hh"].T                                               # (H, 3H)
    b_ih = p["b_ih"].reshape(1, 3 * H)
    b_hh = p["b_hh"].reshape(1, 3 * H)
    return w_edge_t, b_edge, b_ah, w_ih_t, b_ih, w_hh_t, b_hh


def gnn_forward(A, hidden, params, step, *, block_b=None):
    B, N, H = hidden.shape
    if block_b is None:
        block_b = B                    # single grid step: M = B*N rows fills the MXU
    assert B % block_b == 0, "block_b must divide batch"
    nb = B // block_b
    BBN = block_b * N

    # Wrapper-side block-diagonal adjacencies, one per batch block.
    A_in = A[:, :, :N].reshape(nb, block_b, N, N)
    A_out = A[:, :, N:2 * N].reshape(nb, block_b, N, N)
    eye = jnp.eye(block_b, dtype=A.dtype)
    A_in_bd = jnp.einsum('gbij,bc->gbicj', A_in, eye).reshape(nb, BBN, BBN)
    A_out_bd = jnp.einsum('gbij,bc->gbicj', A_out, eye).reshape(nb, BBN, BBN)

    h2 = hidden.reshape(B * N, H)      # fold batch into the matmul M dimension
    weights = _prep_gnn_weights(params, H)

    def full(shape):
        return pl.BlockSpec(shape, lambda *_: (0,) * len(shape))

    out = pl.pallas_call(
        functools.partial(_gnn_kernel, step),
        out_shape=jax.ShapeDtypeStruct((B * N, H), jnp.float32),
        grid=(nb,),
        in_specs=[
            pl.BlockSpec((1, BBN, BBN), lambda b: (b, 0, 0)),        # A_in (block-diag)
            pl.BlockSpec((1, BBN, BBN), lambda b: (b, 0, 0)),        # A_out (block-diag)
            pl.BlockSpec((BBN, H), lambda b: (b, 0)),                # hidden (flattened)
            full((2, H, H)), full((2, H)), full((2, H)),             # edge W^T, edge b, b_iah/b_oah
            full((2, H, 3 * H)), full((1, 3 * H)),                   # w_ih (per half), b_ih
            full((H, 3 * H)), full((1, 3 * H)),                      # w_hh, b_hh
        ],
        out_specs=pl.BlockSpec((BBN, H), lambda b: (b, 0)),
        compiler_params=pltpu.CompilerParams(dimension_semantics=("parallel",)),
    )(A_in_bd, A_out_bd, h2, *weights)
    return out.reshape(B, N, H)


# ----------------------------------------------------------------------------
# Kernel 2: fused alias-gather + ht + mask + attention readout + linear_transform.
#           Gathers are realized as one-hot selection matmuls built in-kernel
#           from an int32 aux input (alias indices + session lengths).
# ----------------------------------------------------------------------------
def _readout_kernel(h_ref, aux_ref,
                    w_att_ref, b_att_ref, w3_ref, w_tf_ref, b_tf_ref,
                    out_ref):
    BBN, H = h_ref.shape
    BB, Sp1 = aux_ref.shape
    S = Sp1 - 1
    N = BBN // BB

    h = h_ref[...]                                                   # (BB*N, H)
    aux = aux_ref[...]                                               # (BB, S+1) int32
    alias = aux[:, :S]                                               # (BB, S)
    lengths = aux[:, S:S + 1]                                        # (BB, 1)

    # seq_hidden gather: one-hot (BB*S, BB*N) selection -> single MXU push.
    row_b = jax.lax.broadcasted_iota(jnp.int32, (BB, S), 0)
    tgt = (row_b * N + alias).reshape(BB * S, 1)
    col = jax.lax.broadcasted_iota(jnp.int32, (BB * S, BB * N), 1)
    sel = (col == tgt).astype(jnp.float32)                           # (BB*S, BB*N)
    seqh = jnp.dot(sel, h, preferred_element_type=jnp.float32)       # (BB*S, H)

    # ht gather: one-hot over seq positions (last valid item of each session).
    row_bb = jax.lax.broadcasted_iota(jnp.int32, (BB, 1), 0)
    tgt_ht = row_bb * S + lengths - 1                                # (BB, 1)
    col_ht = jax.lax.broadcasted_iota(jnp.int32, (BB, BB * S), 1)
    sel_ht = (col_ht == tgt_ht).astype(jnp.float32)                  # (BB, BB*S)
    ht = jnp.dot(sel_ht, seqh, preferred_element_type=jnp.float32)   # (BB, H)

    # mask from lengths (no 1-lane DMA).
    pos = jax.lax.broadcasted_iota(jnp.int32, (BB, S), 1)
    maskf = (pos < lengths).astype(jnp.float32)                      # (BB, S)

    # attention readout
    q1 = jnp.dot(ht, w_att_ref[0],
                 preferred_element_type=jnp.float32) + b_att_ref[0:1]        # (BB, H)
    q2 = jnp.dot(seqh, w_att_ref[1],
                 preferred_element_type=jnp.float32) + b_att_ref[1:2]        # (BB*S, H)
    sig = jax.nn.sigmoid(q1.reshape(BB, 1, H) + q2.reshape(BB, S, H))        # (BB, S, H)
    alpha = jnp.sum(sig * w3_ref[...], axis=-1, keepdims=True)               # (BB, S, 1)
    a = jnp.sum(alpha * seqh.reshape(BB, S, H) * maskf[:, :, None], axis=1)  # (BB, H)

    # linear_transform on cat([a, ht]) as two matmuls (no lane concat)
    out_ref[...] = (jnp.dot(a, w_tf_ref[0], preferred_element_type=jnp.float32)
                    + jnp.dot(ht, w_tf_ref[1], preferred_element_type=jnp.float32)
                    + b_tf_ref[...])


def _prep_readout_weights(p, H):
    w_att_t = jnp.stack([p["w_one"].T, p["w_two"].T])                 # (2, H, H)
    b_att = jnp.stack([p["b_one"], p["b_two"]])                       # (2, H)
    w3 = p["w_three"]                                                 # (1, H)
    w_tf = p["w_transform"]                                           # (H, 2H)
    w_tf_t = jnp.stack([w_tf[:, :H].T, w_tf[:, H:].T])                # (2, H, H)
    b_tf = p["b_transform"].reshape(1, H)
    return w_att_t, b_att, w3, w_tf_t, b_tf


def attention_readout(hidden, alias_inputs, lengths, params, *, block_b=None):
    B, N, H = hidden.shape
    S = alias_inputs.shape[1]
    if block_b is None:
        block_b = B
    assert B % block_b == 0, "block_b must divide batch"
    nb = B // block_b

    h2 = hidden.reshape(B * N, H)
    aux = jnp.concatenate([alias_inputs.astype(jnp.int32),
                           lengths.astype(jnp.int32).reshape(B, 1)], axis=1)   # (B, S+1)
    weights = _prep_readout_weights(params, H)

    def full(shape):
        return pl.BlockSpec(shape, lambda *_: (0,) * len(shape))

    return pl.pallas_call(
        _readout_kernel,
        out_shape=jax.ShapeDtypeStruct((B, H), jnp.float32),
        grid=(nb,),
        in_specs=[
            pl.BlockSpec((block_b * N, H), lambda b: (b, 0)),        # hidden (flattened)
            pl.BlockSpec((block_b, S + 1), lambda b: (b, 0)),        # alias + lengths
            full((2, H, H)), full((2, H)), full((1, H)),             # linear_one/two, w_three
            full((2, H, H)), full((1, H)),                           # linear_transform (split)
        ],
        out_specs=pl.BlockSpec((block_b, H), lambda b: (b, 0)),
        compiler_params=pltpu.CompilerParams(dimension_semantics=("parallel",)),
    )(h2, aux, *weights)


# ----------------------------------------------------------------------------
# Kernel 3: candidate-item scores — tiled (B, H) @ (H, items_tile) matmul over
#           a "parallel" item-tile grid axis (shardable across v7x TCs), with a
#           bf16-streamed, lane-dense zero-padded item table.
# ----------------------------------------------------------------------------
def _scores_kernel(a_ref, emb_t_ref, out_ref):
    a = a_ref[...].astype(emb_t_ref.dtype)
    out_ref[...] = jnp.dot(a, emb_t_ref[...], preferred_element_type=jnp.float32)


def prepare_item_table(embedding, *, items_tile=512, emb_dtype=jnp.bfloat16):
    """Built ONCE per model (hoisted out of the per-call path)."""
    emb1 = embedding[1:]                               # skip padding index 0
    n_items, H = emb1.shape
    n_pad = ((n_items + items_tile - 1) // items_tile) * items_tile
    emb_t = jnp.zeros((H, n_pad), emb_dtype).at[:, :n_items].set(emb1.T.astype(emb_dtype))
    return emb_t, n_items, items_tile


def compute_scores(a, emb_t, n_items, items_tile):
    B, H = a.shape
    Ht, n_pad = emb_t.shape
    assert Ht == H and n_pad % items_tile == 0

    out = pl.pallas_call(
        _scores_kernel,
        out_shape=jax.ShapeDtypeStruct((B, n_pad), jnp.float32),
        grid=(n_pad // items_tile,),
        in_specs=[
            pl.BlockSpec((B, H), lambda j: (0, 0)),                  # readout vectors
            pl.BlockSpec((H, items_tile), lambda j: (0, j)),         # emb^T tile (streamed)
        ],
        out_specs=pl.BlockSpec((B, items_tile), lambda j: (0, j)),
        compiler_params=pltpu.CompilerParams(dimension_semantics=("parallel",)),
    )(a, emb_t)
    return out[:, :n_items]


# ----------------------------------------------------------------------------
# Parameter init (uniform(-1/sqrt(H), 1/sqrt(H)) like the PyTorch module)
# ----------------------------------------------------------------------------
def init_params(key, n_node, H):
    stdv = 1.0 / math.sqrt(H)
    names_shapes = [
        ("embedding", (n_node, H)),
        ("w_ih", (3 * H, 2 * H)), ("w_hh", (3 * H, H)),
        ("b_ih", (3 * H,)), ("b_hh", (3 * H,)),
        ("b_iah", (H,)), ("b_oah", (H,)),
        ("w_edge_in", (H, H)), ("b_edge_in", (H,)),
        ("w_edge_out", (H, H)), ("b_edge_out", (H,)),
        ("w_one", (H, H)), ("b_one", (H,)),
        ("w_two", (H, H)), ("b_two", (H,)),
        ("w_three", (1, H)),
        ("w_transform", (H, 2 * H)), ("b_transform", (H,)),
    ]
    # NOTE: linear_edge_f exists in the module but is unused in forward -> omitted.
    keys = jax.random.split(key, len(names_shapes))
    return {name: jax.random.uniform(k, shape, jnp.float32, -stdv, stdv)
            for k, (name, shape) in zip(keys, names_shapes)}


# ----------------------------------------------------------------------------
# Pure-JAX references (correctness check)
# ----------------------------------------------------------------------------
def _linear(x, w, b=None):
    y = jnp.matmul(x, w.T)
    return y + b if b is not None else y


def gnn_reference(A, hidden, p, step):
    N = A.shape[1]
    H = hidden.shape[-1]
    h = hidden
    for _ in range(step):
        input_in = jnp.matmul(A[:, :, :N], _linear(h, p["w_edge_in"], p["b_edge_in"])) + p["b_iah"]
        input_out = jnp.matmul(A[:, :, N:2 * N], _linear(h, p["w_edge_out"], p["b_edge_out"])) + p["b_oah"]
        inputs = jnp.concatenate([input_in, input_out], axis=2)
        gi = _linear(inputs, p["w_ih"], p["b_ih"])
        gh = _linear(h, p["w_hh"], p["b_hh"])
        i_r, i_i, i_n = gi[..., :H], gi[..., H:2 * H], gi[..., 2 * H:]
        h_r, h_i, h_n = gh[..., :H], gh[..., H:2 * H], gh[..., 2 * H:]
        r = jax.nn.sigmoid(i_r + h_r)
        z = jax.nn.sigmoid(i_i + h_i)
        n = jnp.tanh(i_n + r * h_n)
        h = h - z * (h - n)
    return h


def scores_reference(seq_hidden, mask, ht, p):
    q1 = _linear(ht, p["w_one"], p["b_one"])[:, None, :]
    q2 = _linear(seq_hidden, p["w_two"], p["b_two"])
    alpha = _linear(jax.nn.sigmoid(q1 + q2), p["w_three"])
    a = jnp.sum(alpha * seq_hidden * mask[:, :, None].astype(jnp.float32), axis=1)
    a = _linear(jnp.concatenate([a, ht], axis=1), p["w_transform"], p["b_transform"])
    return jnp.matmul(a, p["embedding"][1:].T)


# ----------------------------------------------------------------------------
if __name__ == "__main__":
    # TODO(synk): H=32 leaves every vreg/MXU 25%-lane-utilized; if the model
    #             config permits, pad item_embedding_dim to 128.
    B, N, S, H = 16, 8, 8, 32     # batch, graph nodes, seq len, hidden dim
    n_node = 41                   # 40 items + padding index 0
    step = 2
    block_b = B                   # M = B*N = 128 rows: fills MXU, single grid step

    key = jax.random.PRNGKey(0)
    kp, ki, ka, kal, kl = jax.random.split(key, 5)
    params = init_params(kp, n_node, H)

    items = jax.random.randint(ki, (B, N), 0, n_node)
    A = jax.random.uniform(ka, (B, N, 2 * N), jnp.float32)
    alias_inputs = jax.random.randint(kal, (B, S), 0, N)
    lengths = jax.random.randint(kl, (B,), 1, S + 1)
    mask = (jnp.arange(S)[None, :] < lengths[:, None]).astype(jnp.int32)

    # Hoisted, once-per-model item-table prep (transposed, zero-padded, bf16).
    emb_t, n_items, items_tile = prepare_item_table(
        params["embedding"], items_tile=512, emb_dtype=jnp.bfloat16)

    # SessionGraph.forward(inputs, A): embedding gather (XLA glue) + GNN (Pallas)
    hidden0 = params["embedding"][items]                       # (B, N, H)
    hidden = gnn_forward(A, hidden0, params, step, block_b=block_b)

    # _forward tail: fused alias gather + ht + mask + attention readout (Pallas),
    # then the item-tile-parallel candidate matmul (Pallas).
    a = attention_readout(hidden, alias_inputs, lengths, params, block_b=block_b)
    scores = compute_scores(a, emb_t, n_items, items_tile)

    jax.block_until_ready((hidden, a, scores))

    # correctness check vs pure-JAX references
    hidden_ref = gnn_reference(A, hidden0, params, step)
    seq_hidden_ref = hidden[jnp.arange(B)[:, None], alias_inputs]  # (B, S, H)
    ht_ref = seq_hidden_ref[jnp.arange(B), lengths - 1]            # (B, H)
    scores_ref = scores_reference(seq_hidden_ref, mask, ht_ref, params)
    np.testing.assert_allclose(np.asarray(hidden), np.asarray(hidden_ref),
                               rtol=2e-2, atol=2e-2)
    np.testing.assert_allclose(np.asarray(scores), np.asarray(scores_ref),
                               rtol=2e-2, atol=2e-2)

    print("KERNEL_OK")
</pallas_src>

<mosaic_0001>
module attributes {stable_mosaic.version = 11 : i64} {
  func.func @_gnn_kernel(%arg0: i32, %arg1: memref<1x128x128xf32, #tpu.memory_space<vmem>>, %arg2: memref<1x128x128xf32, #tpu.memory_space<vmem>>, %arg3: memref<128x32xf32, #tpu.memory_space<vmem>>, %arg4: memref<2x32x32xf32, #tpu.memory_space<vmem>>, %arg5: memref<2x32xf32, #tpu.memory_space<vmem>>, %arg6: memref<2x32xf32, #tpu.memory_space<vmem>>, %arg7: memref<2x32x96xf32, #tpu.memory_space<vmem>>, %arg8: memref<1x96xf32, #tpu.memory_space<vmem>>, %arg9: memref<32x96xf32, #tpu.memory_space<vmem>>, %arg10: memref<1x96xf32, #tpu.memory_space<vmem>>, %arg11: memref<128x32xf32, #tpu.memory_space<vmem>>) attributes {dimension_semantics = [#tpu.dimension_semantics<parallel>], iteration_bounds = array<i64: 1>, scalar_prefetch = 0 : i64, scratch_operands = 0 : i64, tpu.core_type = #tpu.core_type<tc>, window_params = [{transform_indices = @transform_0, window_bounds = array<i64: 1, 128, 128>}, {transform_indices = @transform_1, window_bounds = array<i64: 1, 128, 128>}, {transform_indices = @transform_2, window_bounds = array<i64: 128, 32>}, {pipeline_mode = #tpu.pipeline_mode<synchronous>, transform_indices = @transform_3, window_bounds = array<i64: 2, 32, 32>}, {pipeline_mode = #tpu.pipeline_mode<synchronous>, transform_indices = @transform_4, window_bounds = array<i64: 2, 32>}, {pipeline_mode = #tpu.pipeline_mode<synchronous>, transform_indices = @transform_5, window_bounds = array<i64: 2, 32>}, {pipeline_mode = #tpu.pipeline_mode<synchronous>, transform_indices = @transform_6, window_bounds = array<i64: 2, 32, 96>}, {pipeline_mode = #tpu.pipeline_mode<synchronous>, transform_indices = @transform_7, window_bounds = array<i64: 1, 96>}, {pipeline_mode = #tpu.pipeline_mode<synchronous>, transform_indices = @transform_8, window_bounds = array<i64: 32, 96>}, {pipeline_mode = #tpu.pipeline_mode<synchronous>, transform_indices = @transform_9, window_bounds = array<i64: 1, 96>}, {transform_indices = @transform_10, window_bounds = array<i64: 128, 32>}]} {
    %c0 = arith.constant 0 : index
    %c0_0 = arith.constant 0 : index
    %c0_1 = arith.constant 0 : index
    %0 = vector.load %arg1[%c0, %c0_0, %c0_1] : memref<1x128x128xf32, #tpu.memory_space<vmem>>, vector<1x128x128xf32>
    %1 = vector.shape_cast %0 : vector<1x128x128xf32> to vector<128x128xf32>
    %c0_2 = arith.constant 0 : index
    %c0_3 = arith.constant 0 : index
    %c0_4 = arith.constant 0 : index
    %2 = vector.load %arg2[%c0_2, %c0_3, %c0_4] : memref<1x128x128xf32, #tpu.memory_space<vmem>>, vector<1x128x128xf32>
    %3 = vector.shape_cast %2 : vector<1x128x128xf32> to vector<128x128xf32>
    %c0_5 = arith.constant 0 : index
    %c0_6 = arith.constant 0 : index
    %c0_7 = arith.constant 0 : index
    %4 = vector.load %arg4[%c0_5, %c0_6, %c0_7] : memref<2x32x32xf32, #tpu.memory_space<vmem>>, vector<1x32x32xf32>
    %5 = vector.shape_cast %4 : vector<1x32x32xf32> to vector<32x32xf32>
    %c1 = arith.constant 1 : index
    %c0_8 = arith.constant 0 : index
    %c0_9 = arith.constant 0 : index
    %6 = vector.load %arg4[%c1, %c0_8, %c0_9] : memref<2x32x32xf32, #tpu.memory_space<vmem>>, vector<1x32x32xf32>
    %7 = vector.shape_cast %6 : vector<1x32x32xf32> to vector<32x32xf32>
    %c0_10 = arith.constant 0 : index
    %c0_11 = arith.constant 0 : index
    %8 = vector.load %arg5[%c0_10, %c0_11] : memref<2x32xf32, #tpu.memory_space<vmem>>, vector<1x32xf32>
    %c1_12 = arith.constant 1 : index
    %c0_13 = arith.constant 0 : index
    %9 = vector.load %arg5[%c1_12, %c0_13] : memref<2x32xf32, #tpu.memory_space<vmem>>, vector<1x32xf32>
    %c0_14 = arith.constant 0 : index
    %c0_15 = arith.constant 0 : index
    %10 = vector.load %arg6[%c0_14, %c0_15] : memref<2x32xf32, #tpu.memory_space<vmem>>, vector<1x32xf32>
    %c1_16 = arith.constant 1 : index
    %c0_17 = arith.constant 0 : index
    %11 = vector.load %arg6[%c1_16, %c0_17] : memref<2x32xf32, #tpu.memory_space<vmem>>, vector<1x32xf32>
    %c0_18 = arith.constant 0 : index
    %c0_19 = arith.constant 0 : index
    %c0_20 = arith.constant 0 : index
    %12 = vector.load %arg7[%c0_18, %c0_19, %c0_20] : memref<2x32x96xf32, #tpu.memory_space<vmem>>, vector<1x32x96xf32>
    %13 = vector.shape_cast %12 : vector<1x32x96xf32> to vector<32x96xf32>
    %c1_21 = arith.constant 1 : index
    %c0_22 = arith.constant 0 : index
    %c0_23 = arith.constant 0 : index
    %14 = vector.load %arg7[%c1_21, %c0_22, %c0_23] : memref<2x32x96xf32, #tpu.memory_space<vmem>>, vector<1x32x96xf32>
    %15 = vector.shape_cast %14 : vector<1x32x96xf32> to vector<32x96xf32>
    %c0_24 = arith.constant 0 : index
    %c0_25 = arith.constant 0 : index
    %16 = vector.load %arg9[%c0_24, %c0_25] : memref<32x96xf32, #tpu.memory_space<vmem>>, vector<32x96xf32>
    %c0_26 = arith.constant 0 : index
    %c0_27 = arith.constant 0 : index
    %17 = vector.load %arg8[%c0_26, %c0_27] : memref<1x96xf32, #tpu.memory_space<vmem>>, vector<1x96xf32>
    %c0_28 = arith.constant 0 : index
    %c0_29 = arith.constant 0 : index
    %18 = vector.load %arg10[%c0_28, %c0_29] : memref<1x96xf32, #tpu.memory_space<vmem>>, vector<1x96xf32>
    %c0_30 = arith.constant 0 : index
    %c0_31 = arith.constant 0 : index
    %19 = vector.load %arg3[%c0_30, %c0_31] : memref<128x32xf32, #tpu.memory_space<vmem>>, vector<128x32xf32>
    %c0_i32 = arith.constant 0 : i32
    %cst = arith.constant dense<0.000000e+00> : vector<128x32xf32>
    %20 = tpu.matmul %19, %5, %cst {dimension_numbers = #tpu.dot_dimension_numbers<[1], [0], [0], [1], [0, 0, 1, 1], [], []>} : vector<128x32xf32>, vector<32x32xf32>, vector<128x32xf32> -> vector<128x32xf32>
    %21 = vector.broadcast %8 : vector<1x32xf32> to vector<128x32xf32>
    %22 = arith.addf %20, %21 : vector<128x32xf32>
    %cst_32 = arith.constant dense<0.000000e+00> : vector<128x32xf32>
    %23 = tpu.matmul %19, %7, %cst_32 {dimension_numbers = #tpu.dot_dimension_numbers<[1], [0], [0], [1], [0, 0, 1, 1], [], []>} : vector<128x32xf32>, vector<32x32xf32>, vector<128x32xf32> -> vector<128x32xf32>
    %24 = vector.broadcast %9 : vector<1x32xf32> to vector<128x32xf32>
    %25 = arith.addf %23, %24 : vector<128x32xf32>
    %cst_33 = arith.constant dense<0.000000e+00> : vector<128x32xf32>
    %26 = tpu.matmul %1, %22, %cst_33 {dimension_numbers = #tpu.dot_dimension_numbers<[1], [0], [0], [1], [0, 0, 1, 1], [], []>} : vector<128x128xf32>, vector<128x32xf32>, vector<128x32xf32> -> vector<128x32xf32>
    %27 = vector.broadcast %10 : vector<1x32xf32> to vector<128x32xf32>
    %28 = arith.addf %26, %27 : vector<128x32xf32>
    %cst_34 = arith.constant dense<0.000000e+00> : vector<128x32xf32>
    %29 = tpu.matmul %3, %25, %cst_34 {dimension_numbers = #tpu.dot_dimension_numbers<[1], [0], [0], [1], [0, 0, 1, 1], [], []>} : vector<128x128xf32>, vector<128x32xf32>, vector<128x32xf32> -> vector<128x32xf32>
    %30 = vector.broadcast %11 : vector<1x32xf32> to vector<128x32xf32>
    %31 = arith.addf %29, %30 : vector<128x32xf32>
    %cst_35 = arith.constant dense<0.000000e+00> : vector<128x96xf32>
    %32 = tpu.matmul %28, %13, %cst_35 {dimension_numbers = #tpu.dot_dimension_numbers<[1], [0], [0], [1], [0, 0, 1, 1], [], []>} : vector<128x32xf32>, vector<32x96xf32>, vector<128x96xf32> -> vector<128x96xf32>
    %cst_36 = arith.constant dense<0.000000e+00> : vector<128x96xf32>
    %33 = tpu.matmul %31, %15, %cst_36 {dimension_numbers = #tpu.dot_dimension_numbers<[1], [0], [0], [1], [0, 0, 1, 1], [], []>} : vector<128x32xf32>, vector<32x96xf32>, vector<128x96xf32> -> vector<128x96xf32>
    %34 = arith.addf %32, %33 : vector<128x96xf32>
    %35 = vector.broadcast %17 : vector<1x96xf32> to vector<128x96xf32>
    %36 = arith.addf %34, %35 : vector<128x96xf32>
    %cst_37 = arith.constant dense<0.000000e+00> : vector<128x96xf32>
    %37 = tpu.matmul %19, %16, %cst_37 {dimension_numbers = #tpu.dot_dimension_numbers<[1], [0], [0], [1], [0, 0, 1, 1], [], []>} : vector<128x32xf32>, vector<32x96xf32>, vector<128x96xf32> -> vector<128x96xf32>
    %38 = vector.broadcast %18 : vector<1x96xf32> to vector<128x96xf32>
    %39 = arith.addf %37, %38 : vector<128x96xf32>
    %40 = vector.extract_strided_slice %36 {offsets = [0, 0], sizes = [128, 64], strides = [1, 1]} : vector<128x96xf32> to vector<128x64xf32>
    %41 = vector.extract_strided_slice %39 {offsets = [0, 0], sizes = [128, 64], strides = [1, 1]} : vector<128x96xf32> to vector<128x64xf32>
    %42 = arith.addf %40, %41 : vector<128x64xf32>
    %43 = arith.negf %42 : vector<128x64xf32>
    %44 = math.exp %43 : vector<128x64xf32>
    %cst_38 = arith.constant 1.000000e+00 : f32
    %45 = vector.broadcast %cst_38 : f32 to vector<128x64xf32>
    %46 = arith.addf %45, %44 : vector<128x64xf32>
    %47 = arith.divf %45, %46 : vector<128x64xf32>
    %48 = vector.extract_strided_slice %47 {offsets = [0, 0], sizes = [128, 32], strides = [1, 1]} : vector<128x64xf32> to vector<128x32xf32>
    %49 = vector.extract_strided_slice %47 {offsets = [0, 32], sizes = [128, 32], strides = [1, 1]} : vector<128x64xf32> to vector<128x32xf32>
    %50 = vector.extract_strided_slice %36 {offsets = [0, 64], sizes = [128, 32], strides = [1, 1]} : vector<128x96xf32> to vector<128x32xf32>
    %51 = vector.extract_strided_slice %39 {offsets = [0, 64], sizes = [128, 32], strides = [1, 1]} : vector<128x96xf32> to vector<128x32xf32>
    %52 = arith.mulf %48, %51 : vector<128x32xf32>
    %53 = arith.addf %50, %52 : vector<128x32xf32>
    %54 = math.tanh %53 : vector<128x32xf32>
    %55 = arith.subf %19, %54 : vector<128x32xf32>
    %56 = arith.mulf %49, %55 : vector<128x32xf32>
    %57 = arith.subf %19, %56 : vector<128x32xf32>
    %c1_i32 = arith.constant 1 : i32
    %cst_39 = arith.constant dense<0.000000e+00> : vector<128x32xf32>
    %58 = tpu.matmul %57, %5, %cst_39 {dimension_numbers = #tpu.dot_dimension_numbers<[1], [0], [0], [1], [0, 0, 1, 1], [], []>} : vector<128x32xf32>, vector<32x32xf32>, vector<128x32xf32> -> vector<128x32xf32>
    %59 = vector.broadcast %8 : vector<1x32xf32> to vector<128x32xf32>
    %60 = arith.addf %58, %59 : vector<128x32xf32>
    %cst_40 = arith.constant dense<0.000000e+00> : vector<128x32xf32>
    %61 = tpu.matmul %57, %7, %cst_40 {dimension_numbers = #tpu.dot_dimension_numbers<[1], [0], [0], [1], [0, 0, 1, 1], [], []>} : vector<128x32xf32>, vector<32x32xf32>, vector<128x32xf32> -> vector<128x32xf32>
    %62 = vector.broadcast %9 : vector<1x32xf32> to vector<128x32xf32>
    %63 = arith.addf %61, %62 : vector<128x32xf32>
    %cst_41 = arith.constant dense<0.000000e+00> : vector<128x32xf32>
    %64 = tpu.matmul %1, %60, %cst_41 {dimension_numbers = #tpu.dot_dimension_numbers<[1], [0], [0], [1], [0, 0, 1, 1], [], []>} : vector<128x128xf32>, vector<128x32xf32>, vector<128x32xf32> -> vector<128x32xf32>
    %65 = vector.broadcast %10 : vector<1x32xf32> to vector<128x32xf32>
    %66 = arith.addf %64, %65 : vector<128x32xf32>
    %cst_42 = arith.constant dense<0.000000e+00> : vector<128x32xf32>
    %67 = tpu.matmul %3, %63, %cst_42 {dimension_numbers = #tpu.dot_dimension_numbers<[1], [0], [0], [1], [0, 0, 1, 1], [], []>} : vector<128x128xf32>, vector<128x32xf32>, vector<128x32xf32> -> vector<128x32xf32>
    %68 = vector.broadcast %11 : vector<1x32xf32> to vector<128x32xf32>
    %69 = arith.addf %67, %68 : vector<128x32xf32>
    %cst_43 = arith.constant dense<0.000000e+00> : vector<128x96xf32>
    %70 = tpu.matmul %66, %13, %cst_43 {dimension_numbers = #tpu.dot_dimension_numbers<[1], [0], [0], [1], [0, 0, 1, 1], [], []>} : vector<128x32xf32>, vector<32x96xf32>, vector<128x96xf32> -> vector<128x96xf32>
    %cst_44 = arith.constant dense<0.000000e+00> : vector<128x96xf32>
    %71 = tpu.matmul %69, %15, %cst_44 {dimension_numbers = #tpu.dot_dimension_numbers<[1], [0], [0], [1], [0, 0, 1, 1], [], []>} : vector<128x32xf32>, vector<32x96xf32>, vector<128x96xf32> -> vector<128x96xf32>
    %72 = arith.addf %70, %71 : vector<128x96xf32>
    %73 = vector.broadcast %17 : vector<1x96xf32> to vector<128x96xf32>
    %74 = arith.addf %72, %73 : vector<128x96xf32>
    %cst_45 = arith.constant dense<0.000000e+00> : vector<128x96xf32>
    %75 = tpu.matmul %57, %16, %cst_45 {dimension_numbers = #tpu.dot_dimension_numbers<[1], [0], [0], [1], [0, 0, 1, 1], [], []>} : vector<128x32xf32>, vector<32x96xf32>, vector<128x96xf32> -> vector<128x96xf32>
    %76 = vector.broadcast %18 : vector<1x96xf32> to vector<128x96xf32>
    %77 = arith.addf %75, %76 : vector<128x96xf32>
    %78 = vector.extract_strided_slice %74 {offsets = [0, 0], sizes = [128, 64], strides = [1, 1]} : vector<128x96xf32> to vector<128x64xf32>
    %79 = vector.extract_strided_slice %77 {offsets = [0, 0], sizes = [128, 64], strides = [1, 1]} : vector<128x96xf32> to vector<128x64xf32>
    %80 = arith.addf %78, %79 : vector<128x64xf32>
    %81 = arith.negf %80 : vector<128x64xf32>
    %82 = math.exp %81 : vector<128x64xf32>
    %cst_46 = arith.constant 1.000000e+00 : f32
    %83 = vector.broadcast %cst_46 : f32 to vector<128x64xf32>
    %84 = arith.addf %83, %82 : vector<128x64xf32>
    %85 = arith.divf %83, %84 : vector<128x64xf32>
    %86 = vector.extract_strided_slice %85 {offsets = [0, 0], sizes = [128, 32], strides = [1, 1]} : vector<128x64xf32> to vector<128x32xf32>
    %87 = vector.extract_strided_slice %85 {offsets = [0, 32], sizes = [128, 32], strides = [1, 1]} : vector<128x64xf32> to vector<128x32xf32>
    %88 = vector.extract_strided_slice %74 {offsets = [0, 64], sizes = [128, 32], strides = [1, 1]} : vector<128x96xf32> to vector<128x32xf32>
    %89 = vector.extract_strided_slice %77 {offsets = [0, 64], sizes = [128, 32], strides = [1, 1]} : vector<128x96xf32> to vector<128x32xf32>
    %90 = arith.mulf %86, %89 : vector<128x32xf32>
    %91 = arith.addf %88, %90 : vector<128x32xf32>
    %92 = math.tanh %91 : vector<128x32xf32>
    %93 = arith.subf %57, %92 : vector<128x32xf32>
    %94 = arith.mulf %87, %93 : vector<128x32xf32>
    %95 = arith.subf %57, %94 : vector<128x32xf32>
    %c0_47 = arith.constant 0 : index
    %c0_48 = arith.constant 0 : index
    %96 = vector.load %arg11[%c0_47, %c0_48] : memref<128x32xf32, #tpu.memory_space<vmem>>, vector<128x32xf32>
    tpu.vector_store %arg11[%c0_47, %c0_48], %95 {strides = array<i32>} : memref<128x32xf32, #tpu.memory_space<vmem>>, vector<128x32xf32>,
    return
  }
  func.func @transform_0(%arg0: i32) -> (i32, i32, i32) {
    %c0_i32 = arith.constant 0 : i32
    %c0_i32_0 = arith.constant 0 : i32
    %c0_i32_1 = arith.constant 0 : i32
    return %arg0, %c0_i32, %c0_i32_0 : i32, i32, i32
  }
  func.func @transform_1(%arg0: i32) -> (i32, i32, i32) {
    %c0_i32 = arith.constant 0 : i32
    %c0_i32_0 = arith.constant 0 : i32
    %c0_i32_1 = arith.constant 0 : i32
    return %arg0, %c0_i32, %c0_i32_0 : i32, i32, i32
  }
  func.func @transform_2(%arg0: i32) -> (i32, i32) {
    %c0_i32 = arith.constant 0 : i32
    %c0_i32_0 = arith.constant 0 : i32
    return %arg0, %c0_i32 : i32, i32
  }
  func.func @transform_3(%arg0: i32) -> (i32, i32, i32) {
    %c0_i32 = arith.constant 0 : i32
    %c0_i32_0 = arith.constant 0 : i32
    %c0_i32_1 = arith.constant 0 : i32
    %c0_i32_2 = arith.constant 0 : i32
    return %c0_i32, %c0_i32_0, %c0_i32_1 : i32, i32, i32
  }
  func.func @transform_4(%arg0: i32) -> (i32, i32) {
    %c0_i32 = arith.constant 0 : i32
    %c0_i32_0 = arith.constant 0 : i32
    %c0_i32_1 = arith.constant 0 : i32
    return %c0_i32, %c0_i32_0 : i32, i32
  }
  func.func @transform_5(%arg0: i32) -> (i32, i32) {
    %c0_i32 = arith.constant 0 : i32
    %c0_i32_0 = arith.constant 0 : i32
    %c0_i32_1 = arith.constant 0 : i32
    return %c0_i32, %c0_i32_0 : i32, i32
  }
  func.func @transform_6(%arg0: i32) -> (i32, i32, i32) {
    %c0_i32 = arith.constant 0 : i32
    %c0_i32_0 = arith.constant 0 : i32
    %c0_i32_1 = arith.constant 0 : i32
    %c0_i32_2 = arith.constant 0 : i32
    return %c0_i32, %c0_i32_0, %c0_i32_1 : i32, i32, i32
  }
  func.func @transform_7(%arg0: i32) -> (i32, i32) {
    %c0_i32 = arith.constant 0 : i32
    %c0_i32_0 = arith.constant 0 : i32
    %c0_i32_1 = arith.constant 0 : i32
    return %c0_i32, %c0_i32_0 : i32, i32
  }
  func.func @transform_8(%arg0: i32) -> (i32, i32) {
    %c0_i32 = arith.constant 0 : i32
    %c0_i32_0 = arith.constant 0 : i32
    %c0_i32_1 = arith.constant 0 : i32
    return %c0_i32, %c0_i32_0 : i32, i32
  }
  func.func @transform_9(%arg0: i32) -> (i32, i32) {
    %c0_i32 = arith.constant 0 : i32
    %c0_i32_0 = arith.constant 0 : i32
    %c0_i32_1 = arith.constant 0 : i32
    return %c0_i32, %c0_i32_0 : i32, i32
  }
  func.func @transform_10(%arg0: i32) -> (i32, i32) {
    %c0_i32 = arith.constant 0 : i32
    %c0_i32_0 = arith.constant 0 : i32
    return %arg0, %c0_i32 : i32, i32
  }
}

</mosaic_0001>

<llo_original>
// kernel: tpu_custom_call.1
$region0: #{tpu_custom_call.1}
  #allocation0 [shape = 'u32[]', space=smem, size = 0x4, offset = 0x4, fixed_abs, tag = 'smem constant byte address 0x4 - core index']
  #allocation1 [shape = 'u32[72,128]{1,0:T(1,128)}', space=vmem, size = 0x9000, scoped, tag = 'internal scratch']
  %s0 = inlined_call_operand.vmem [shape: f32[1,128,128], index: 0, kind: input, shape index: {}]
  %s1 = inlined_call_operand.hbm [shape: f32[1,128,128], index: 1, kind: input, shape index: {}]
  %s2 = inlined_call_operand.vmem [shape: f32[128,32], index: 2, kind: input, shape index: {}]
  %s3 = inlined_call_operand.hbm [shape: f32[2,32,32], index: 3, kind: input, shape index: {}]
  %s4 = inlined_call_operand.vmem [shape: f32[2,32], index: 4, kind: input, shape index: {}]
  %s5 = inlined_call_operand.hbm [shape: f32[2,32], index: 5, kind: input, shape index: {}]
  %s6 = inlined_call_operand.hbm [shape: f32[2,32,96], index: 6, kind: input, shape index: {}]
  %s7 = inlined_call_operand.vmem [shape: f32[1,96], index: 7, kind: input, shape index: {}]
  %s8 = inlined_call_operand.vmem [shape: f32[32,96], index: 8, kind: input, shape index: {}]
  %s9 = inlined_call_operand.vmem [shape: f32[1,96], index: 9, kind: input, shape index: {}]
  %s10 = inlined_call_operand.vmem [shape: f32[128,32], index: 10, kind: output, shape index: {}]
  %s11 = sld [smem:[#allocation0]]
  $region66: #{tpu_custom_call.1} parent=0
    _
  %s13 = ssub.s32 1, %s11
  %s14 = scalar_select 0, %s13, %s11
  $region1: #{tpu_custom_call.1} parent=0
    #allocation2 [shape = 'u8[65536]{0}', space=vmem, size = 0x10000, scoped, tag = 'input window, operand 1, single buffered']
    #allocation3 [shape = 's32[1]{0}', space=sflag, size = 0x4, scoped, tag = 'scoped memory for tpu_custom_call.1']
    #allocation4 [shape = 'u8[32768]{0}', space=vmem, size = 0x8000, scoped, tag = 'input window, operand 3, single buffered']
    #allocation5 [shape = 's32[1]{0}', space=sflag, size = 0x4, scoped, tag = 'scoped memory for tpu_custom_call.1']
    #allocation6 [shape = 'u8[1024]{0}', space=vmem, size = 0x400, scoped, tag = 'input window, operand 5, single buffered']
    #allocation7 [shape = 'u8[32768]{0}', space=vmem, size = 0x8000, scoped, tag = 'input window, operand 6, single buffered']
    #allocation8 [shape = 's32[1]{0}', space=sflag, size = 0x4, scoped, tag = 'scoped memory for tpu_custom_call.1']
    %15 = vsyncpa [#allocation3], 0
    %16 = vsyncpa [#allocation5], 0
    %17 = vsyncpa [#allocation8], 0
    // Predicated region
    $region2: #{tpu_custom_call.1} parent=1 // pred_check
      _
    $region3: #{tpu_custom_call.1} parent=1 // pred_check_branch
      %19 = sbr.rel (0) target = $region5
    $region4: #{tpu_custom_call.1} parent=1 // pred_region
      _
    $region5: #{tpu_custom_call.1} parent=1 // pred_fallthru
      _
    // Predicated region
    $region6: #{tpu_custom_call.1} parent=1 // pred_check
      _
    $region7: #{tpu_custom_call.1} parent=1 // pred_check_branch
      %21 = sbr.rel (0) target = $region9
    $region8: #{tpu_custom_call.1} parent=1 // pred_region
      %23 = vsyncadd [#allocation3], 0
      %s24 = sshll.u32 %s1, 4
      %s25 = int_to_ptr.hbm [resolvable:$true] %s24
      %s26 = sshll.u32 [#allocation2], 4
      %s27 = int_to_ptr.vmem [resolvable:$true] %s26
      %32 = dma.hbm_to_vmem [thread:$0]  %s25, 2048, %s27, [#allocation3], 128, 128, 8
    $region9: #{tpu_custom_call.1} parent=1 // pred_fallthru
      _
    // Predicated region
    $region10: #{tpu_custom_call.1} parent=1 // pred_check
      _
    $region11: #{tpu_custom_call.1} parent=1 // pred_check_branch
      %34 = sbr.rel (0) target = $region13
    $region12: #{tpu_custom_call.1} parent=1 // pred_region
      _
    $region13: #{tpu_custom_call.1} parent=1 // pred_fallthru
      _
    // Predicated region
    $region14: #{tpu_custom_call.1} parent=1 // pred_check
      _
    $region15: #{tpu_custom_call.1} parent=1 // pred_check_branch
      %36 = sbr.rel (0) target = $region17
    $region16: #{tpu_custom_call.1} parent=1 // pred_region
      %38 = vsyncadd [#allocation5], 0
      %s39 = sshll.u32 %s3, 4
      %s40 = int_to_ptr.hbm [resolvable:$true] %s39
      %s41 = sshll.u32 [#allocation4], 4
      %s42 = int_to_ptr.vmem [resolvable:$true] %s41
      %47 = dma.hbm_to_vmem [thread:$0]  %s40, 1024, %s42, [#allocation5], 128, 128, 8
    $region17: #{tpu_custom_call.1} parent=1 // pred_fallthru
      _
    // Predicated region
    $region18: #{tpu_custom_call.1} parent=1 // pred_check
      _
    $region19: #{tpu_custom_call.1} parent=1 // pred_check_branch
      %49 = sbr.rel (0) target = $region21
    $region20: #{tpu_custom_call.1} parent=1 // pred_region
      _
    $region21: #{tpu_custom_call.1} parent=1 // pred_fallthru
      _
    // Predicated region
    $region22: #{tpu_custom_call.1} parent=1 // pred_check
      _
    $region23: #{tpu_custom_call.1} parent=1 // pred_check_branch
      %51 = sbr.rel (0) target = $region25
    $region24: #{tpu_custom_call.1} parent=1 // pred_region
      %53 = vsyncadd [#allocation5], 0
      %s55 = sshll.u32 %s5, 4
      %s56 = int_to_ptr.hbm [resolvable:$true] %s55
      %s57 = sshll.u32 [#allocation6], 4
      %s58 = int_to_ptr.vmem [resolvable:$true] %s57
      %60 = dma.hbm_to_vmem [thread:$0]  %s56, 32, %s58, [#allocation5]
    $region25: #{tpu_custom_call.1} parent=1 // pred_fallthru
      _
    // Predicated region
    $region26: #{tpu_custom_call.1} parent=1 // pred_check
      _
    $region27: #{tpu_custom_call.1} parent=1 // pred_check_branch
      %62 = sbr.rel (0) target = $region29
    $region28: #{tpu_custom_call.1} parent=1 // pred_region
      %64 = vsyncadd [#allocation8], 0
      %s65 = sshll.u32 %s6, 4
      %s66 = int_to_ptr.hbm [resolvable:$true] %s65
      %s67 = sshll.u32 [#allocation7], 4
      %s68 = int_to_ptr.vmem [resolvable:$true] %s67
      %73 = dma.hbm_to_vmem [thread:$0]  %s66, 1024, %s68, [#allocation8], 128, 128, 8
    $region29: #{tpu_custom_call.1} parent=1 // pred_fallthru
      _
    // Predicated region
    $region30: #{tpu_custom_call.1} parent=1 // pred_check
      _
    $region31: #{tpu_custom_call.1} parent=1 // pred_check_branch
      %75 = sbr.rel (0) target = $region33
    $region32: #{tpu_custom_call.1} parent=1 // pred_region
      _
    $region33: #{tpu_custom_call.1} parent=1 // pred_fallthru
      _
    // Predicated region
    $region34: #{tpu_custom_call.1} parent=1 // pred_check
      _
    $region35: #{tpu_custom_call.1} parent=1 // pred_check_branch
      %77 = sbr.rel (0) target = $region37
    $region36: #{tpu_custom_call.1} parent=1 // pred_region
      _
    $region37: #{tpu_custom_call.1} parent=1 // pred_fallthru
      _
    // Predicated region
    $region38: #{tpu_custom_call.1} parent=1 // pred_check
      _
    $region39: #{tpu_custom_call.1} parent=1 // pred_check_branch
      %79 = sbr.rel (0) target = $region41
    $region40: #{tpu_custom_call.1} parent=1 // pred_region
      _
    $region41: #{tpu_custom_call.1} parent=1 // pred_fallthru
      _
    // Predicated region
    $region42: #{tpu_custom_call.1} parent=1 // pred_check
      _
    $region43: #{tpu_custom_call.1} parent=1 // pred_check_branch
      %81 = sbr.rel (0) target = $region45
    $region44: #{tpu_custom_call.1} parent=1 // pred_region
      %83 = dma.done [#allocation3], 2048
    $region45: #{tpu_custom_call.1} parent=1 // pred_fallthru
      _
    // Predicated region
    $region46: #{tpu_custom_call.1} parent=1 // pred_check
      _
    $region47: #{tpu_custom_call.1} parent=1 // pred_check_branch
      %85 = sbr.rel (0) target = $region49
    $region48: #{tpu_custom_call.1} parent=1 // pred_region
      %87 = dma.done [#allocation5], 1024
    $region49: #{tpu_custom_call.1} parent=1 // pred_fallthru
      _
    // Predicated region
    $region50: #{tpu_custom_call.1} parent=1 // pred_check
      _
    $region51: #{tpu_custom_call.1} parent=1 // pred_check_branch
      %89 = sbr.rel (0) target = $region53
    $region52: #{tpu_custom_call.1} parent=1 // pred_region
      %91 = dma.done [#allocation5], 32
    $region53: #{tpu_custom_call.1} parent=1 // pred_fallthru
      _
    // Predicated region
    $region54: #{tpu_custom_call.1} parent=1 // pred_check
      _
    $region55: #{tpu_custom_call.1} parent=1 // pred_check_branch
      %93 = sbr.rel (0) target = $region57
    $region56: #{tpu_custom_call.1} parent=1 // pred_region
      %95 = dma.done [#allocation8], 1024
    $region57: #{tpu_custom_call.1} parent=1 // pred_fallthru
      _
    %v96 = vld [vmem:[%s0] sm:$0xff]
    %v97 = vld [vmem:[%s0 + $0x8] sm:$0xff]
    %v98 = vld [vmem:[%s0 + $0x10] sm:$0xff]
    %v99 = vld [vmem:[%s0 + $0x18] sm:$0xff]
    %v100 = vld [vmem:[%s0 + $0x20] sm:$0xff]
    %v101 = vld [vmem:[%s0 + $0x28] sm:$0xff]
    %v102 = vld [vmem:[%s0 + $0x30] sm:$0xff]
    %v103 = vld [vmem:[%s0 + $0x38] sm:$0xff]
    %v104 = vld [vmem:[%s0 + $0x40] sm:$0xff]
    %v105 = vld [vmem:[%s0 + $0x48] sm:$0xff]
    %v106 = vld [vmem:[%s0 + $0x50] sm:$0xff]
    %v107 = vld [vmem:[%s0 + $0x58] sm:$0xff]
    %v108 = vld [vmem:[%s0 + $0x60] sm:$0xff]
    %v109 = vld [vmem:[%s0 + $0x68] sm:$0xff]
    %v110 = vld [vmem:[%s0 + $0x70] sm:$0xff]
    %v111 = vld [vmem:[%s0 + $0x78] sm:$0xff]
    %v112 = vld [vmem:[#allocation2] sm:$0xff]
    %v113 = vld [vmem:[#allocation2 + $0x8] sm:$0xff]
    %v114 = vld [vmem:[#allocation2 + $0x10] sm:$0xff]
    %v115 = vld [vmem:[#allocation2 + $0x18] sm:$0xff]
    %v116 = vld [vmem:[#allocation2 + $0x20] sm:$0xff]
    %v117 = vld [vmem:[#allocation2 + $0x28] sm:$0xff]
    %v118 = vld [vmem:[#allocation2 + $0x30] sm:$0xff]
    %v119 = vld [vmem:[#allocation2 + $0x38] sm:$0xff]
    %v120 = vld [vmem:[#allocation2 + $0x40] sm:$0xff]
    %v121 = vld [vmem:[#allocation2 + $0x48] sm:$0xff]
    %v122 = vld [vmem:[#allocation2 + $0x50] sm:$0xff]
    %v123 = vld [vmem:[#allocation2 + $0x58] sm:$0xff]
    %v124 = vld [vmem:[#allocation2 + $0x60] sm:$0xff]
    %v125 = vld [vmem:[#allocation2 + $0x68] sm:$0xff]
    %v126 = vld [vmem:[#allocation2 + $0x70] sm:$0xff]
    %v127 = vld [vmem:[#allocation2 + $0x78] sm:$0xff]
    %v128 = vld [vmem:[#allocation4] sm:$0xff]
    %v129 = vld [vmem:[#allocation4 + $0x8] sm:$0xff]
    %v130 = vld [vmem:[#allocation4 + $0x10] sm:$0xff]
    %v131 = vld [vmem:[#allocation4 + $0x18] sm:$0xff]
    %s132 = scalar_lea.vmem [#allocation4], 32
    %v133 = vld [vmem:[%s132] sm:$0xff]
    %v134 = vld [vmem:[%s132 + $0x8] sm:$0xff]
    %v135 = vld [vmem:[%s132 + $0x10] sm:$0xff]
    %v136 = vld [vmem:[%s132 + $0x18] sm:$0xff]
    %v137 = vld [vmem:[%s4] sm:$0x1]
    %v138 = vld [vmem:[%s4 + $0x1] sm:$0x1]
    %v139 = vld [vmem:[#allocation6] sm:$0x1]
    %v140 = vld [vmem:[#allocation6 + $0x1] sm:$0x1]
    %v141 = vld [vmem:[#allocation7] sm:$0xff]
    %v142 = vld [vmem:[#allocation7 + $0x8] sm:$0xff]
    %v143 = vld [vmem:[#allocation7 + $0x10] sm:$0xff]
    %v144 = vld [vmem:[#allocation7 + $0x18] sm:$0xff]
    %s145 = scalar_lea.vmem [#allocation7], 32
    %v146 = vld [vmem:[%s145] sm:$0xff]
    %v147 = vld [vmem:[%s145 + $0x8] sm:$0xff]
    %v148 = vld [vmem:[%s145 + $0x10] sm:$0xff]
    %v149 = vld [vmem:[%s145 + $0x18] sm:$0xff]
    %v150 = vld [vmem:[%s8] sm:$0xff]
    %v151 = vld [vmem:[%s8 + $0x8] sm:$0xff]
    %v152 = vld [vmem:[%s8 + $0x10] sm:$0xff]
    %v153 = vld [vmem:[%s8 + $0x18] sm:$0xff]
    %v154 = vld [vmem:[%s7] sm:$0x1]
    %v155 = vld [vmem:[%s9] sm:$0x1]
    %v156 = vld [vmem:[%s2] sm:$0xff]
    %v157 = vld [vmem:[%s2 + $0x8] sm:$0xff]
    %v158 = vld [vmem:[%s2 + $0x10] sm:$0xff]
    %v159 = vld [vmem:[%s2 + $0x18] sm:$0xff]
    %v160 = vld [vmem:[%s2 + $0x20] sm:$0xff]
    %v161 = vld [vmem:[%s2 + $0x28] sm:$0xff]
    %v162 = vld [vmem:[%s2 + $0x30] sm:$0xff]
    %v163 = vld [vmem:[%s2 + $0x38] sm:$0xff]
    %v164 = vld [vmem:[%s2 + $0x40] sm:$0xff]
    %v165 = vld [vmem:[%s2 + $0x48] sm:$0xff]
    %v166 = vld [vmem:[%s2 + $0x50] sm:$0xff]
    %v167 = vld [vmem:[%s2 + $0x58] sm:$0xff]
    %v168 = vld [vmem:[%s2 + $0x60] sm:$0xff]
    %v169 = vld [vmem:[%s2 + $0x68] sm:$0xff]
    %v170 = vld [vmem:[%s2 + $0x70] sm:$0xff]
    %v171 = vld [vmem:[%s2 + $0x78] sm:$0xff]
    %v172 = vperm.slane %v137, 0
    %vm173 = vcmask 261120
    %v175 = vsel %vm173, %v156, 0
    %v178 = vsel %vm173, %v157, 0
    %v181 = vsel %vm173, %v158, 0
    %v184 = vsel %vm173, %v159, 0
    %v187 = vsel %vm173, %v160, 0
    %v190 = vsel %vm173, %v161, 0
    %v193 = vsel %vm173, %v162, 0
    %v196 = vsel %vm173, %v163, 0
    %v199 = vsel %vm173, %v164, 0
    %v202 = vsel %vm173, %v165, 0
    %v205 = vsel %vm173, %v166, 0
    %v208 = vsel %vm173, %v167, 0
    %v211 = vsel %vm173, %v168, 0
    %v214 = vsel %vm173, %v169, 0
    %v217 = vsel %vm173, %v170, 0
    %v220 = vsel %vm173, %v171, 0
    %222 = vmatpush.msra.mxu0 0.0
    %223 = vmatpush.msra.mxu0 0.0
    %224 = vmatpush.msra.mxu0 0.0
    %225 = vmatpush.msra.mxu0 0.0
    %226 = vmatpush.msra.mxu0 0.0
    %227 = vmatpush.msra.mxu0 0.0
    %228 = vmatpush.msra.mxu0 0.0
    %229 = vmatpush.msra.mxu0 0.0
    %230 = vmatpush.msra.mxu0 0.0
    %231 = vmatpush.msra.mxu0 0.0
    %232 = vmatpush.msra.mxu0 0.0
    %233 = vmatpush.msra.mxu0 0.0
    %234 = vmatpush.msra.mxu0 %v131
    %235 = vmatpush.msra.mxu0 %v130
    %236 = vmatpush.msra.mxu0 %v129
    %237 = vmatpush.msra.mxu0 %v128
    %238 = vmatmul.f32.gmra.mxu0 %v175
    %v239 = vpop.f32.mrf.mxu0
    %v240 = vadd.f32 %v172, %v239
    %241 = vmatmul.f32.gmra.mxu0 %v178
    %v242 = vpop.f32.mrf.mxu0
    %v243 = vadd.f32 %v172, %v242
    %244 = vmatmul.f32.gmra.mxu0 %v181
    %v245 = vpop.f32.mrf.mxu0
    %v246 = vadd.f32 %v172, %v245
    %247 = vmatmul.f32.gmra.mxu0 %v184
    %v248 = vpop.f32.mrf.mxu0
    %v249 = vadd.f32 %v172, %v248
    %250 = vmatmul.f32.gmra.mxu0 %v187
    %v251 = vpop.f32.mrf.mxu0
    %v252 = vadd.f32 %v172, %v251
    %253 = vmatmul.f32.gmra.mxu0 %v190
    %v254 = vpop.f32.mrf.mxu0
    %v255 = vadd.f32 %v172, %v254
    %256 = vmatmul.f32.gmra.mxu0 %v193
    %v257 = vpop.f32.mrf.mxu0
    %v258 = vadd.f32 %v172, %v257
    %259 = vmatmul.f32.gmra.mxu0 %v196
    %v260 = vpop.f32.mrf.mxu0
    %v261 = vadd.f32 %v172, %v260
    %262 = vmatmul.f32.gmra.mxu0 %v199
    %v263 = vpop.f32.mrf.mxu0
    %v264 = vadd.f32 %v172, %v263
    %265 = vmatmul.f32.gmra.mxu0 %v202
    %v266 = vpop.f32.mrf.mxu0
    %v267 = vadd.f32 %v172, %v266
    %268 = vmatmul.f32.gmra.mxu0 %v205
    %v269 = vpop.f32.mrf.mxu0
    %v270 = vadd.f32 %v172, %v269
    %271 = vmatmul.f32.gmra.mxu0 %v208
    %v272 = vpop.f32.mrf.mxu0
    %v273 = vadd.f32 %v172, %v272
    %274 = vmatmul.f32.gmra.mxu0 %v211
    %v275 = vpop.f32.mrf.mxu0
    %v276 = vadd.f32 %v172, %v275
    %277 = vmatmul.f32.gmra.mxu0 %v214
    %v278 = vpop.f32.mrf.mxu0
    %v279 = vadd.f32 %v172, %v278
    %280 = vmatmul.f32.gmra.mxu0 %v217
    %v281 = vpop.f32.mrf.mxu0
    %v282 = vadd.f32 %v172, %v281
    %283 = vmatmul.f32.gmra.mxu0 %v220
    %v284 = vpop.f32.mrf.mxu0
    %v285 = vadd.f32 %v172, %v284
    %286 = vdwg.mxu0
    %v287 = vperm.slane %v138, 0
    %288 = vmatpush.msra.mxu0 0.0
    %289 = vmatpush.msra.mxu0 0.0
    %290 = vmatpush.msra.mxu0 0.0
    %291 = vmatpush.msra.mxu0 0.0
    %292 = vmatpush.msra.mxu0 0.0
    %293 = vmatpush.msra.mxu0 0.0
    %294 = vmatpush.msra.mxu0 0.0
    %295 = vmatpush.msra.mxu0 0.0
    %296 = vmatpush.msra.mxu0 0.0
    %297 = vmatpush.msra.mxu0 0.0
    %298 = vmatpush.msra.mxu0 0.0
    %299 = vmatpush.msra.mxu0 0.0
    %300 = vmatpush.msra.mxu0 %v136
    %301 = vmatpush.msra.mxu0 %v135
    %302 = vmatpush.msra.mxu0 %v134
    %303 = vmatpush.msra.mxu0 %v133
    %304 = vmatmul.f32.gmra.mxu0 %v175
    %v305 = vpop.f32.mrf.mxu0
    %v306 = vadd.f32 %v287, %v305
    %307 = vmatmul.f32.gmra.mxu0 %v178
    %v308 = vpop.f32.mrf.mxu0
    %v309 = vadd.f32 %v287, %v308
    %310 = vmatmul.f32.gmra.mxu0 %v181
    %v311 = vpop.f32.mrf.mxu0
    %v312 = vadd.f32 %v287, %v311
    %313 = vmatmul.f32.gmra.mxu0 %v184
    %v314 = vpop.f32.mrf.mxu0
    %v315 = vadd.f32 %v287, %v314
    %316 = vmatmul.f32.gmra.mxu0 %v187
    %v317 = vpop.f32.mrf.mxu0
    %v318 = vadd.f32 %v287, %v317
    %319 = vmatmul.f32.gmra.mxu0 %v190
    %v320 = vpop.f32.mrf.mxu0
    %v321 = vadd.f32 %v287, %v320
    %322 = vmatmul.f32.gmra.mxu0 %v193
    %v323 = vpop.f32.mrf.mxu0
    %v324 = vadd.f32 %v287, %v323
    %325 = vmatmul.f32.gmra.mxu0 %v196
    %v326 = vpop.f32.mrf.mxu0
    %v327 = vadd.f32 %v287, %v326
    %328 = vmatmul.f32.gmra.mxu0 %v199
    %v329 = vpop.f32.mrf.mxu0
    %v330 = vadd.f32 %v287, %v329
    %331 = vmatmul.f32.gmra.mxu0 %v202
    %v332 = vpop.f32.mrf.mxu0
    %v333 = vadd.f32 %v287, %v332
    %334 = vmatmul.f32.gmra.mxu0 %v205
    %v335 = vpop.f32.mrf.mxu0
    %v336 = vadd.f32 %v287, %v335
    %337 = vmatmul.f32.gmra.mxu0 %v208
    %v338 = vpop.f32.mrf.mxu0
    %v339 = vadd.f32 %v287, %v338
    %340 = vmatmul.f32.gmra.mxu0 %v211
    %v341 = vpop.f32.mrf.mxu0
    %v342 = vadd.f32 %v287, %v341
    %343 = vmatmul.f32.gmra.mxu0 %v214
    %v344 = vpop.f32.mrf.mxu0
    %v345 = vadd.f32 %v287, %v344
    %346 = vmatmul.f32.gmra.mxu0 %v217
    %v347 = vpop.f32.mrf.mxu0
    %v348 = vadd.f32 %v287, %v347
    %349 = vmatmul.f32.gmra.mxu0 %v220
    %v350 = vpop.f32.mrf.mxu0
    %v351 = vadd.f32 %v287, %v350
    %352 = vdwg.mxu0
    %v353 = vperm.slane %v139, 0
    %354 = vmatpush.msra.mxu0 %v285
    %355 = vmatpush.msra.mxu0 %v282
    %356 = vmatpush.msra.mxu0 %v279
    %357 = vmatpush.msra.mxu0 %v276
    %358 = vmatpush.msra.mxu0 %v273
    %359 = vmatpush.msra.mxu0 %v270
    %360 = vmatpush.msra.mxu0 %v267
    %361 = vmatpush.msra.mxu0 %v264
    %362 = vmatpush.msra.mxu0 %v261
    %363 = vmatpush.msra.mxu0 %v258
    %364 = vmatpush.msra.mxu0 %v255
    %365 = vmatpush.msra.mxu0 %v252
    %366 = vmatpush.msra.mxu0 %v249
    %367 = vmatpush.msra.mxu0 %v246
    %368 = vmatpush.msra.mxu0 %v243
    %369 = vmatpush.msra.mxu0 %v240
    %370 = vmatmul.f32.gmra.mxu0 %v96
    %v371 = vpop.f32.mrf.mxu0
    %v372 = vadd.f32 %v353, %v371
    %373 = vmatmul.f32.gmra.mxu0 %v97
    %v374 = vpop.f32.mrf.mxu0
    %v375 = vadd.f32 %v353, %v374
    %376 = vmatmul.f32.gmra.mxu0 %v98
    %v377 = vpop.f32.mrf.mxu0
    %v378 = vadd.f32 %v353, %v377
    %379 = vmatmul.f32.gmra.mxu0 %v99
    %v380 = vpop.f32.mrf.mxu0
    %v381 = vadd.f32 %v353, %v380
    %382 = vmatmul.f32.gmra.mxu0 %v100
    %v383 = vpop.f32.mrf.mxu0
    %v384 = vadd.f32 %v353, %v383
    %385 = vmatmul.f32.gmra.mxu0 %v101
    %v386 = vpop.f32.mrf.mxu0
    %v387 = vadd.f32 %v353, %v386
    %388 = vmatmul.f32.gmra.mxu0 %v102
    %v389 = vpop.f32.mrf.mxu0
    %v390 = vadd.f32 %v353, %v389
    %391 = vmatmul.f32.gmra.mxu0 %v103
    %v392 = vpop.f32.mrf.mxu0
    %v393 = vadd.f32 %v353, %v392
    %394 = vmatmul.f32.gmra.mxu0 %v104
    %v395 = vpop.f32.mrf.mxu0
    %v396 = vadd.f32 %v353, %v395
    %397 = vmatmul.f32.gmra.mxu0 %v105
    %v398 = vpop.f32.mrf.mxu0
    %v399 = vadd.f32 %v353, %v398
    %400 = vmatmul.f32.gmra.mxu0 %v106
    %v401 = vpop.f32.mrf.mxu0
    %v402 = vadd.f32 %v353, %v401
    %403 = vmatmul.f32.gmra.mxu0 %v107
    %v404 = vpop.f32.mrf.mxu0
    %v405 = vadd.f32 %v353, %v404
    %406 = vmatmul.f32.gmra.mxu0 %v108
    %v407 = vpop.f32.mrf.mxu0
    %v408 = vadd.f32 %v353, %v407
    %409 = vmatmul.f32.gmra.mxu0 %v109
    %v410 = vpop.f32.mrf.mxu0
    %v411 = vadd.f32 %v353, %v410
    %412 = vmatmul.f32.gmra.mxu0 %v110
    %v413 = vpop.f32.mrf.mxu0
    %v414 = vadd.f32 %v353, %v413
    %415 = vmatmul.f32.gmra.mxu0 %v111
    %v416 = vpop.f32.mrf.mxu0
    %v417 = vadd.f32 %v353, %v416
    %418 = vdwg.mxu0
    %v419 = vperm.slane %v140, 0
    %420 = vmatpush.msra.mxu0 %v351
    %421 = vmatpush.msra.mxu0 %v348
    %422 = vmatpush.msra.mxu0 %v345
    %423 = vmatpush.msra.mxu0 %v342
    %424 = vmatpush.msra.mxu0 %v339
    %425 = vmatpush.msra.mxu0 %v336
    %426 = vmatpush.msra.mxu0 %v333
    %427 = vmatpush.msra.mxu0 %v330
    %428 = vmatpush.msra.mxu0 %v327
    %429 = vmatpush.msra.mxu0 %v324
    %430 = vmatpush.msra.mxu0 %v321
    %431 = vmatpush.msra.mxu0 %v318
    %432 = vmatpush.msra.mxu0 %v315
    %433 = vmatpush.msra.mxu0 %v312
    %434 = vmatpush.msra.mxu0 %v309
    %435 = vmatpush.msra.mxu0 %v306
    %436 = vmatmul.f32.gmra.mxu0 %v112
    %v437 = vpop.f32.mrf.mxu0
    %v438 = vadd.f32 %v419, %v437
    %439 = vmatmul.f32.gmra.mxu0 %v113
    %v440 = vpop.f32.mrf.mxu0
    %v441 = vadd.f32 %v419, %v440
    %442 = vmatmul.f32.gmra.mxu0 %v114
    %v443 = vpop.f32.mrf.mxu0
    %v444 = vadd.f32 %v419, %v443
    %445 = vmatmul.f32.gmra.mxu0 %v115
    %v446 = vpop.f32.mrf.mxu0
    %v447 = vadd.f32 %v419, %v446
    %448 = vmatmul.f32.gmra.mxu0 %v116
    %v449 = vpop.f32.mrf.mxu0
    %v450 = vadd.f32 %v419, %v449
    %451 = vmatmul.f32.gmra.mxu0 %v117
    %v452 = vpop.f32.mrf.mxu0
    %v453 = vadd.f32 %v419, %v452
    %454 = vmatmul.f32.gmra.mxu0 %v118
    %v455 = vpop.f32.mrf.mxu0
    %v456 = vadd.f32 %v419, %v455
    %457 = vmatmul.f32.gmra.mxu0 %v119
    %v458 = vpop.f32.mrf.mxu0
    %v459 = vadd.f32 %v419, %v458
    %460 = vmatmul.f32.gmra.mxu0 %v120
    %v461 = vpop.f32.mrf.mxu0
    %v462 = vadd.f32 %v419, %v461
    %463 = vmatmul.f32.gmra.mxu0 %v121
    %v464 = vpop.f32.mrf.mxu0
    %v465 = vadd.f32 %v419, %v464
    %466 = vmatmul.f32.gmra.mxu0 %v122
    %v467 = vpop.f32.mrf.mxu0
    %v468 = vadd.f32 %v419, %v467
    %469 = vmatmul.f32.gmra.mxu0 %v123
    %v470 = vpop.f32.mrf.mxu0
    %v471 = vadd.f32 %v419, %v470
    %472 = vmatmul.f32.gmra.mxu0 %v124
    %v473 = vpop.f32.mrf.mxu0
    %v474 = vadd.f32 %v419, %v473
    %475 = vmatmul.f32.gmra.mxu0 %v125
    %v476 = vpop.f32.mrf.mxu0
    %v477 = vadd.f32 %v419, %v476
    %478 = vmatmul.f32.gmra.mxu0 %v126
    %v479 = vpop.f32.mrf.mxu0
    %v480 = vadd.f32 %v419, %v479
    %481 = vmatmul.f32.gmra.mxu0 %v127
    %v482 = vpop.f32.mrf.mxu0
    %v483 = vadd.f32 %v419, %v482
    %484 = vdwg.mxu0
    %v486 = vsel %vm173, %v438, 0
    %v489 = vsel %vm173, %v441, 0
    %v492 = vsel %vm173, %v444, 0
    %v495 = vsel %vm173, %v447, 0
    %v498 = vsel %vm173, %v450, 0
    %v501 = vsel %vm173, %v453, 0
    %v504 = vsel %vm173, %v456, 0
    %v507 = vsel %vm173, %v459, 0
    %v510 = vsel %vm173, %v462, 0
    %v513 = vsel %vm173, %v465, 0
    %v516 = vsel %vm173, %v468, 0
    %v519 = vsel %vm173, %v471, 0
    %v522 = vsel %vm173, %v474, 0
    %v525 = vsel %vm173, %v477, 0
    %v528 = vsel %vm173, %v480, 0
    %v531 = vsel %vm173, %v483, 0
    %533 = vmatpush.msra.mxu0 0.0
    %534 = vmatpush.msra.mxu0 0.0
    %535 = vmatpush.msra.mxu0 0.0
    %536 = vmatpush.msra.mxu0 0.0
    %537 = vmatpush.msra.mxu0 0.0
    %538 = vmatpush.msra.mxu0 0.0
    %539 = vmatpush.msra.mxu0 0.0
    %540 = vmatpush.msra.mxu0 0.0
    %541 = vmatpush.msra.mxu0 0.0
    %542 = vmatpush.msra.mxu0 0.0
    %543 = vmatpush.msra.mxu0 0.0
    %544 = vmatpush.msra.mxu0 0.0
    %545 = vmatpush.msra.mxu0 %v149
    %546 = vmatpush.msra.mxu0 %v148
    %547 = vmatpush.msra.mxu0 %v147
    %548 = vmatpush.msra.mxu0 %v146
    %549 = vmatmul.f32.gmra.mxu0 %v486
    %v550 = vpop.f32.mrf.mxu0
    %v551 = vadd.f32 0.0, %v550
    %552 = vmatmul.f32.gmra.mxu0 %v489
    %v553 = vpop.f32.mrf.mxu0
    %v554 = vadd.f32 0.0, %v553
    %555 = vmatmul.f32.gmra.mxu0 %v492
    %v556 = vpop.f32.mrf.mxu0
    %v557 = vadd.f32 0.0, %v556
    %558 = vmatmul.f32.gmra.mxu0 %v495
    %v559 = vpop.f32.mrf.mxu0
    %v560 = vadd.f32 0.0, %v559
    %561 = vmatmul.f32.gmra.mxu0 %v498
    %v562 = vpop.f32.mrf.mxu0
    %v563 = vadd.f32 0.0, %v562
    %564 = vmatmul.f32.gmra.mxu0 %v501
    %v565 = vpop.f32.mrf.mxu0
    %v566 = vadd.f32 0.0, %v565
    %567 = vmatmul.f32.gmra.mxu0 %v504
    %v568 = vpop.f32.mrf.mxu0
    %v569 = vadd.f32 0.0, %v568
    %570 = vmatmul.f32.gmra.mxu0 %v507
    %v571 = vpop.f32.mrf.mxu0
    %v572 = vadd.f32 0.0, %v571
    %573 = vmatmul.f32.gmra.mxu0 %v510
    %v574 = vpop.f32.mrf.mxu0
    %v575 = vadd.f32 0.0, %v574
    %576 = vmatmul.f32.gmra.mxu0 %v513
    %v577 = vpop.f32.mrf.mxu0
    %v578 = vadd.f32 0.0, %v577
    %579 = vmatmul.f32.gmra.mxu0 %v516
    %v580 = vpop.f32.mrf.mxu0
    %v581 = vadd.f32 0.0, %v580
    %582 = vmatmul.f32.gmra.mxu0 %v519
    %v583 = vpop.f32.mrf.mxu0
    %v584 = vadd.f32 0.0, %v583
    %585 = vmatmul.f32.gmra.mxu0 %v522
    %v586 = vpop.f32.mrf.mxu0
    %v587 = vadd.f32 0.0, %v586
    %588 = vmatmul.f32.gmra.mxu0 %v525
    %v589 = vpop.f32.mrf.mxu0
    %v590 = vadd.f32 0.0, %v589
    %591 = vmatmul.f32.gmra.mxu0 %v528
    %v592 = vpop.f32.mrf.mxu0
    %v593 = vadd.f32 0.0, %v592
    %594 = vmatmul.f32.gmra.mxu0 %v531
    %v595 = vpop.f32.mrf.mxu0
    %v596 = vadd.f32 0.0, %v595
    %597 = vdwg.mxu0
    %v599 = vsel %vm173, %v372, 0
    %v602 = vsel %vm173, %v375, 0
    %v605 = vsel %vm173, %v378, 0
    %v608 = vsel %vm173, %v381, 0
    %v611 = vsel %vm173, %v384, 0
    %v614 = vsel %vm173, %v387, 0
    %v617 = vsel %vm173, %v390, 0
    %v620 = vsel %vm173, %v393, 0
    %v623 = vsel %vm173, %v396, 0
    %v626 = vsel %vm173, %v399, 0
    %v629 = vsel %vm173, %v402, 0
    %v632 = vsel %vm173, %v405, 0
    %v635 = vsel %vm173, %v408, 0
    %v638 = vsel %vm173, %v411, 0
    %v641 = vsel %vm173, %v414, 0
    %v644 = vsel %vm173, %v417, 0
    %646 = vmatpush.msra.mxu0 0.0
    %647 = vmatpush.msra.mxu0 0.0
    %648 = vmatpush.msra.mxu0 0.0
    %649 = vmatpush.msra.mxu0 0.0
    %650 = vmatpush.msra.mxu0 0.0
    %651 = vmatpush.msra.mxu0 0.0
    %652 = vmatpush.msra.mxu0 0.0
    %653 = vmatpush.msra.mxu0 0.0
    %654 = vmatpush.msra.mxu0 0.0
    %655 = vmatpush.msra.mxu0 0.0
    %656 = vmatpush.msra.mxu0 0.0
    %657 = vmatpush.msra.mxu0 0.0
    %658 = vmatpush.msra.mxu0 %v144
    %659 = vmatpush.msra.mxu0 %v143
    %660 = vmatpush.msra.mxu0 %v142
    %661 = vmatpush.msra.mxu0 %v141
    %662 = vmatmul.f32.gmra.mxu0 %v599
    %v663 = vpop.f32.mrf.mxu0
    %v664 = vadd.f32 %v551, %v663
    %665 = vmatmul.f32.gmra.mxu0 %v602
    %v666 = vpop.f32.mrf.mxu0
    %v667 = vadd.f32 %v554, %v666
    %668 = vmatmul.f32.gmra.mxu0 %v605
    %v669 = vpop.f32.mrf.mxu0
    %v670 = vadd.f32 %v557, %v669
    %671 = vmatmul.f32.gmra.mxu0 %v608
    %v672 = vpop.f32.mrf.mxu0
    %v673 = vadd.f32 %v560, %v672
    %674 = vmatmul.f32.gmra.mxu0 %v611
    %v675 = vpop.f32.mrf.mxu0
    %v676 = vadd.f32 %v563, %v675
    %677 = vmatmul.f32.gmra.mxu0 %v614
    %v678 = vpop.f32.mrf.mxu0
    %v679 = vadd.f32 %v566, %v678
    %680 = vmatmul.f32.gmra.mxu0 %v617
    %v681 = vpop.f32.mrf.mxu0
    %v682 = vadd.f32 %v569, %v681
    %683 = vmatmul.f32.gmra.mxu0 %v620
    %v684 = vpop.f32.mrf.mxu0
    %v685 = vadd.f32 %v572, %v684
    %686 = vmatmul.f32.gmra.mxu0 %v623
    %v687 = vpop.f32.mrf.mxu0
    %v688 = vadd.f32 %v575, %v687
    %689 = vmatmul.f32.gmra.mxu0 %v626
    %v690 = vpop.f32.mrf.mxu0
    %v691 = vadd.f32 %v578, %v690
    %692 = vmatmul.f32.gmra.mxu0 %v629
    %v693 = vpop.f32.mrf.mxu0
    %v694 = vadd.f32 %v581, %v693
    %695 = vmatmul.f32.gmra.mxu0 %v632
    %v696 = vpop.f32.mrf.mxu0
    %v697 = vadd.f32 %v584, %v696
    %698 = vmatmul.f32.gmra.mxu0 %v635
    %v699 = vpop.f32.mrf.mxu0
    %v700 = vadd.f32 %v587, %v699
    %701 = vmatmul.f32.gmra.mxu0 %v638
    %v702 = vpop.f32.mrf.mxu0
    %v703 = vadd.f32 %v590, %v702
    %704 = vmatmul.f32.gmra.mxu0 %v641
    %v705 = vpop.f32.mrf.mxu0
    %v706 = vadd.f32 %v593, %v705
    %707 = vmatmul.f32.gmra.mxu0 %v644
    %v708 = vpop.f32.mrf.mxu0
    %v709 = vadd.f32 %v596, %v708
    %710 = vdwg.mxu0
    %v712 = vperm.slane %v154, 0
    %v714 = vadd.f32 %v664, %v712
    %v715 = vadd.f32 %v667, %v712
    %v716 = vadd.f32 %v670, %v712
    %v717 = vadd.f32 %v673, %v712
    %v718 = vadd.f32 %v676, %v712
    %v719 = vadd.f32 %v679, %v712
    %v720 = vadd.f32 %v682, %v712
    %v721 = vadd.f32 %v685, %v712
    %v722 = vadd.f32 %v688, %v712
    %v723 = vadd.f32 %v691, %v712
    %v724 = vadd.f32 %v694, %v712
    %v725 = vadd.f32 %v697, %v712
    %v726 = vadd.f32 %v700, %v712
    %v727 = vadd.f32 %v703, %v712
    %v728 = vadd.f32 %v706, %v712
    %v729 = vadd.f32 %v709, %v712
    %v731 = vperm.slane %v155, 0
    %733 = vmatpush.msra.mxu0 0.0
    %734 = vmatpush.msra.mxu0 0.0
    %735 = vmatpush.msra.mxu0 0.0
    %736 = vmatpush.msra.mxu0 0.0
    %737 = vmatpush.msra.mxu0 0.0
    %738 = vmatpush.msra.mxu0 0.0
    %739 = vmatpush.msra.mxu0 0.0
    %740 = vmatpush.msra.mxu0 0.0
    %741 = vmatpush.msra.mxu0 0.0
    %742 = vmatpush.msra.mxu0 0.0
    %743 = vmatpush.msra.mxu0 0.0
    %744 = vmatpush.msra.mxu0 0.0
    %745 = vmatpush.msra.mxu0 %v153
    %746 = vmatpush.msra.mxu0 %v152
    %747 = vmatpush.msra.mxu0 %v151
    %748 = vmatpush.msra.mxu0 %v150
    %749 = vmatmul.f32.gmra.mxu0 %v175
    %v750 = vpop.f32.mrf.mxu0
    %v751 = vadd.f32 %v731, %v750
    %752 = vmatmul.f32.gmra.mxu0 %v178
    %v753 = vpop.f32.mrf.mxu0
    %v754 = vadd.f32 %v731, %v753
    %755 = vmatmul.f32.gmra.mxu0 %v181
    %v756 = vpop.f32.mrf.mxu0
    %v757 = vadd.f32 %v731, %v756
    %758 = vmatmul.f32.gmra.mxu0 %v184
    %v759 = vpop.f32.mrf.mxu0
    %v760 = vadd.f32 %v731, %v759
    %761 = vmatmul.f32.gmra.mxu0 %v187
    %v762 = vpop.f32.mrf.mxu0
    %v763 = vadd.f32 %v731, %v762
    %764 = vmatmul.f32.gmra.mxu0 %v190
    %v765 = vpop.f32.mrf.mxu0
    %v766 = vadd.f32 %v731, %v765
    %767 = vmatmul.f32.gmra.mxu0 %v193
    %v768 = vpop.f32.mrf.mxu0
    %v769 = vadd.f32 %v731, %v768
    %770 = vmatmul.f32.gmra.mxu0 %v196
    %v771 = vpop.f32.mrf.mxu0
    %v772 = vadd.f32 %v731, %v771
    %773 = vmatmul.f32.gmra.mxu0 %v199
    %v774 = vpop.f32.mrf.mxu0
    %v775 = vadd.f32 %v731, %v774
    %776 = vmatmul.f32.gmra.mxu0 %v202
    %v777 = vpop.f32.mrf.mxu0
    %v778 = vadd.f32 %v731, %v777
    %779 = vmatmul.f32.gmra.mxu0 %v205
    %v780 = vpop.f32.mrf.mxu0
    %v781 = vadd.f32 %v731, %v780
    %782 = vmatmul.f32.gmra.mxu0 %v208
    %v783 = vpop.f32.mrf.mxu0
    %v784 = vadd.f32 %v731, %v783
    %785 = vmatmul.f32.gmra.mxu0 %v211
    %v786 = vpop.f32.mrf.mxu0
    %v787 = vadd.f32 %v731, %v786
    %788 = vmatmul.f32.gmra.mxu0 %v214
    %v789 = vpop.f32.mrf.mxu0
    %v790 = vadd.f32 %v731, %v789
    %791 = vmatmul.f32.gmra.mxu0 %v217
    %v792 = vpop.f32.mrf.mxu0
    %v793 = vadd.f32 %v731, %v792
    %794 = vmatmul.f32.gmra.mxu0 %v220
    %v795 = vpop.f32.mrf.mxu0
    %v796 = vadd.f32 %v731, %v795
    %797 = vdwg.mxu0
    %v798 = vadd.f32 %v714, %v751
    %v799 = vadd.f32 %v715, %v754
    %v800 = vadd.f32 %v716, %v757
    %v801 = vadd.f32 %v717, %v760
    %v802 = vadd.f32 %v718, %v763
    %v803 = vadd.f32 %v719, %v766
    %v804 = vadd.f32 %v720, %v769
    %v805 = vadd.f32 %v721, %v772
    %v806 = vadd.f32 %v722, %v775
    %v807 = vadd.f32 %v723, %v778
    %v808 = vadd.f32 %v724, %v781
    %v809 = vadd.f32 %v725, %v784
    %v810 = vadd.f32 %v726, %v787
    %v811 = vadd.f32 %v727, %v790
    %v812 = vadd.f32 %v728, %v793
    %v813 = vadd.f32 %v729, %v796
    %v814 = vxor.u32 %v798, 2147483648
    %v815 = vxor.u32 %v799, 2147483648
    %v816 = vxor.u32 %v800, 2147483648
    %v817 = vxor.u32 %v801, 2147483648
    %v818 = vxor.u32 %v802, 2147483648
    %v819 = vxor.u32 %v803, 2147483648
    %v820 = vxor.u32 %v804, 2147483648
    %v821 = vxor.u32 %v805, 2147483648
    %v822 = vxor.u32 %v806, 2147483648
    %v823 = vxor.u32 %v807, 2147483648
    %v824 = vxor.u32 %v808, 2147483648
    %v825 = vxor.u32 %v809, 2147483648
    %v826 = vxor.u32 %v810, 2147483648
    %v827 = vxor.u32 %v811, 2147483648
    %v828 = vxor.u32 %v812, 2147483648
    %v829 = vxor.u32 %v813, 2147483648
    %v830 = vmul.f32 %v814, 1.442695
    %v831 = vpow.pop %v830
    %v832 = vmul.f32 %v815, 1.442695
    %v833 = vpow.pop %v832
    %v834 = vmul.f32 %v816, 1.442695
    %v835 = vpow.pop %v834
    %v836 = vmul.f32 %v817, 1.442695
    %v837 = vpow.pop %v836
    %v838 = vmul.f32 %v818, 1.442695
    %v839 = vpow.pop %v838
    %v840 = vmul.f32 %v819, 1.442695
    %v841 = vpow.pop %v840
    %v842 = vmul.f32 %v820, 1.442695
    %v843 = vpow.pop %v842
    %v844 = vmul.f32 %v821, 1.442695
    %v845 = vpow.pop %v844
    %v846 = vmul.f32 %v822, 1.442695
    %v847 = vpow.pop %v846
    %v848 = vmul.f32 %v823, 1.442695
    %v849 = vpow.pop %v848
    %v850 = vmul.f32 %v824, 1.442695
    %v851 = vpow.pop %v850
    %v852 = vmul.f32 %v825, 1.442695
    %v853 = vpow.pop %v852
    %v854 = vmul.f32 %v826, 1.442695
    %v855 = vpow.pop %v854
    %v856 = vmul.f32 %v827, 1.442695
    %v857 = vpow.pop %v856
    %v858 = vmul.f32 %v828, 1.442695
    %v859 = vpow.pop %v858
    %v860 = vmul.f32 %v829, 1.442695
    %v861 = vpow.pop %v860
    %v862 = vadd.f32 %v831, 1.0
    %v863 = vadd.f32 %v833, 1.0
    %v864 = vadd.f32 %v835, 1.0
    %v865 = vadd.f32 %v837, 1.0
    %v866 = vadd.f32 %v839, 1.0
    %v867 = vadd.f32 %v841, 1.0
    %v868 = vadd.f32 %v843, 1.0
    %v869 = vadd.f32 %v845, 1.0
    %v870 = vadd.f32 %v847, 1.0
    %v871 = vadd.f32 %v849, 1.0
    %v872 = vadd.f32 %v851, 1.0
    %v873 = vadd.f32 %v853, 1.0
    %v874 = vadd.f32 %v855, 1.0
    %v875 = vadd.f32 %v857, 1.0
    %v876 = vadd.f32 %v859, 1.0
    %v877 = vadd.f32 %v861, 1.0
    %v878 = vrcp.pop %v862
    %v879 = vmul.f32 %v862, %v878
    %v880 = vsub.f32 1.0, %v879
    %v881 = vmul.f32 %v878, %v880
    %v882 = vadd.f32 %v878, %v881
    %vm883 = vweird.f32 %v862
    %vm884 = vweird.f32 %v878
    %vm885 = vmor %vm883, %vm884
    %v886 = vsel %vm885, %v878, %v882
    %v887 = vand.u32 2147483647, %v862
    %vm888 = vcmp.eq.f32.partialorder %v887, 8.507059e+37
    %v889 = vand.u32 %v862, 2147483648
    %v890 = vor.u32 1.1754944e-38, %v889
    %v891 = vsel %vm888, %v890, %v886
    %v892 = vmul.f32 1.0, %v891
    %v893 = vrcp.pop %v863
    %v894 = vmul.f32 %v863, %v893
    %v895 = vsub.f32 1.0, %v894
    %v896 = vmul.f32 %v893, %v895
    %v897 = vadd.f32 %v893, %v896
    %vm898 = vweird.f32 %v863
    %vm899 = vweird.f32 %v893
    %vm900 = vmor %vm898, %vm899
    %v901 = vsel %vm900, %v893, %v897
    %v902 = vand.u32 2147483647, %v863
    %vm903 = vcmp.eq.f32.partialorder %v902, 8.507059e+37
    %v904 = vand.u32 %v863, 2147483648
    %v905 = vor.u32 1.1754944e-38, %v904
    %v906 = vsel %vm903, %v905, %v901
    %v907 = vmul.f32 1.0, %v906
    %v908 = vrcp.pop %v864
    %v909 = vmul.f32 %v864, %v908
    %v910 = vsub.f32 1.0, %v909
    %v911 = vmul.f32 %v908, %v910
    %v912 = vadd.f32 %v908, %v911
    %vm913 = vweird.f32 %v864
    %vm914 = vweird.f32 %v908
    %vm915 = vmor %vm913, %vm914
    %v916 = vsel %vm915, %v908, %v912
    %v917 = vand.u32 2147483647, %v864
    %vm918 = vcmp.eq.f32.partialorder %v917, 8.507059e+37
    %v919 = vand.u32 %v864, 2147483648
    %v920 = vor.u32 1.1754944e-38, %v919
    %v921 = vsel %vm918, %v920, %v916
    %v922 = vmul.f32 1.0, %v921
    %v923 = vrcp.pop %v865
    %v924 = vmul.f32 %v865, %v923
    %v925 = vsub.f32 1.0, %v924
    %v926 = vmul.f32 %v923, %v925
    %v927 = vadd.f32 %v923, %v926
    %vm928 = vweird.f32 %v865
    %vm929 = vweird.f32 %v923
    %vm930 = vmor %vm928, %vm929
    %v931 = vsel %vm930, %v923, %v927
    %v932 = vand.u32 2147483647, %v865
    %vm933 = vcmp.eq.f32.partialorder %v932, 8.507059e+37
    %v934 = vand.u32 %v865, 2147483648
    %v935 = vor.u32 1.1754944e-38, %v934
    %v936 = vsel %vm933, %v935, %v931
    %v937 = vmul.f32 1.0, %v936
    %v938 = vrcp.pop %v866
    %v939 = vmul.f32 %v866, %v938
    %v940 = vsub.f32 1.0, %v939
    %v941 = vmul.f32 %v938, %v940
    %v942 = vadd.f32 %v938, %v941
    %vm943 = vweird.f32 %v866
    %vm944 = vweird.f32 %v938
    %vm945 = vmor %vm943, %vm944
    %v946 = vsel %vm945, %v938, %v942
    %v947 = vand.u32 2147483647, %v866
    %vm948 = vcmp.eq.f32.partialorder %v947, 8.507059e+37
    %v949 = vand.u32 %v866, 2147483648
    %v950 = vor.u32 1.1754944e-38, %v949
    %v951 = vsel %vm948, %v950, %v946
    %v952 = vmul.f32 1.0, %v951
    %v953 = vrcp.pop %v867
    %v954 = vmul.f32 %v867, %v953
    %v955 = vsub.f32 1.0, %v954
    %v956 = vmul.f32 %v953, %v955
    %v957 = vadd.f32 %v953, %v956
    %vm958 = vweird.f32 %v867
    %vm959 = vweird.f32 %v953
    %vm960 = vmor %vm958, %vm959
    %v961 = vsel %vm960, %v953, %v957
    %v962 = vand.u32 2147483647, %v867
    %vm963 = vcmp.eq.f32.partialorder %v962, 8.507059e+37
    %v964 = vand.u32 %v867, 2147483648
    %v965 = vor.u32 1.1754944e-38, %v964
    %v966 = vsel %vm963, %v965, %v961
    %v967 = vmul.f32 1.0, %v966
    %v968 = vrcp.pop %v868
    %v969 = vmul.f32 %v868, %v968
    %v970 = vsub.f32 1.0, %v969
    %v971 = vmul.f32 %v968, %v970
    %v972 = vadd.f32 %v968, %v971
    %vm973 = vweird.f32 %v868
    %vm974 = vweird.f32 %v968
    %vm975 = vmor %vm973, %vm974
    %v976 = vsel %vm975, %v968, %v972
    %v977 = vand.u32 2147483647, %v868
    %vm978 = vcmp.eq.f32.partialorder %v977, 8.507059e+37
    %v979 = vand.u32 %v868, 2147483648
    %v980 = vor.u32 1.1754944e-38, %v979
    %v981 = vsel %vm978, %v980, %v976
    %v982 = vmul.f32 1.0, %v981
    %v983 = vrcp.pop %v869
    %v984 = vmul.f32 %v869, %v983
    %v985 = vsub.f32 1.0, %v984
    %v986 = vmul.f32 %v983, %v985
    %v987 = vadd.f32 %v983, %v986
    %vm988 = vweird.f32 %v869
    %vm989 = vweird.f32 %v983
    %vm990 = vmor %vm988, %vm989
    %v991 = vsel %vm990, %v983, %v987
    %v992 = vand.u32 2147483647, %v869
    %vm993 = vcmp.eq.f32.partialorder %v992, 8.507059e+37
    %v994 = vand.u32 %v869, 2147483648
    %v995 = vor.u32 1.1754944e-38, %v994
    %v996 = vsel %vm993, %v995, %v991
    %v997 = vmul.f32 1.0, %v996
    %v998 = vrcp.pop %v870
    %v999 = vmul.f32 %v870, %v998
    %v1000 = vsub.f32 1.0, %v999
    %v1001 = vmul.f32 %v998, %v1000
    %v1002 = vadd.f32 %v998, %v1001
    %vm1003 = vweird.f32 %v870
    %vm1004 = vweird.f32 %v998
    %vm1005 = vmor %vm1003, %vm1004
    %v1006 = vsel %vm1005, %v998, %v1002
    %v1007 = vand.u32 2147483647, %v870
    %vm1008 = vcmp.eq.f32.partialorder %v1007, 8.507059e+37
    %v1009 = vand.u32 %v870, 2147483648
    %v1010 = vor.u32 1.1754944e-38, %v1009
    %v1011 = vsel %vm1008, %v1010, %v1006
    %v1012 = vmul.f32 1.0, %v1011
    %v1013 = vrcp.pop %v871
    %v1014 = vmul.f32 %v871, %v1013
    %v1015 = vsub.f32 1.0, %v1014
    %v1016 = vmul.f32 %v1013, %v1015
    %v1017 = vadd.f32 %v1013, %v1016
    %vm1018 = vweird.f32 %v871
    %vm1019 = vweird.f32 %v1013
    %vm1020 = vmor %vm1018, %vm1019
    %v1021 = vsel %vm1020, %v1013, %v1017
    %v1022 = vand.u32 2147483647, %v871
    %vm1023 = vcmp.eq.f32.partialorder %v1022, 8.507059e+37
    %v1024 = vand.u32 %v871, 2147483648
    %v1025 = vor.u32 1.1754944e-38, %v1024
    %v1026 = vsel %vm1023, %v1025, %v1021
    %v1027 = vmul.f32 1.0, %v1026
    %v1028 = vrcp.pop %v872
    %v1029 = vmul.f32 %v872, %v1028
    %v1030 = vsub.f32 1.0, %v1029
    %v1031 = vmul.f32 %v1028, %v1030
    %v1032 = vadd.f32 %v1028, %v1031
    %vm1033 = vweird.f32 %v872
    %vm1034 = vweird.f32 %v1028
    %vm1035 = vmor %vm1033, %vm1034
    %v1036 = vsel %vm1035, %v1028, %v1032
    %v1037 = vand.u32 2147483647, %v872
    %vm1038 = vcmp.eq.f32.partialorder %v1037, 8.507059e+37
    %v1039 = vand.u32 %v872, 2147483648
    %v1040 = vor.u32 1.1754944e-38, %v1039
    %v1041 = vsel %vm1038, %v1040, %v1036
    %v1042 = vmul.f32 1.0, %v1041
    %v1043 = vrcp.pop %v873
    %v1044 = vmul.f32 %v873, %v1043
    %v1045 = vsub.f32 1.0, %v1044
    %v1046 = vmul.f32 %v1043, %v1045
    %v1047 = vadd.f32 %v1043, %v1046
    %vm1048 = vweird.f32 %v873
    %vm1049 = vweird.f32 %v1043
    %vm1050 = vmor %vm1048, %vm1049
    %v1051 = vsel %vm1050, %v1043, %v1047
    %v1052 = vand.u32 2147483647, %v873
    %vm1053 = vcmp.eq.f32.partialorder %v1052, 8.507059e+37
    %v1054 = vand.u32 %v873, 2147483648
    %v1055 = vor.u32 1.1754944e-38, %v1054
    %v1056 = vsel %vm1053, %v1055, %v1051
    %v1057 = vmul.f32 1.0, %v1056
    %v1058 = vrcp.pop %v874
    %v1059 = vmul.f32 %v874, %v1058
    %v1060 = vsub.f32 1.0, %v1059
    %v1061 = vmul.f32 %v1058, %v1060
    %v1062 = vadd.f32 %v1058, %v1061
    %vm1063 = vweird.f32 %v874
    %vm1064 = vweird.f32 %v1058
    %vm1065 = vmor %vm1063, %vm1064
    %v1066 = vsel %vm1065, %v1058, %v1062
    %v1067 = vand.u32 2147483647, %v874
    %vm1068 = vcmp.eq.f32.partialorder %v1067, 8.507059e+37
    %v1069 = vand.u32 %v874, 2147483648
    %v1070 = vor.u32 1.1754944e-38, %v1069
    %v1071 = vsel %vm1068, %v1070, %v1066
    %v1072 = vmul.f32 1.0, %v1071
    %v1073 = vrcp.pop %v875
    %v1074 = vmul.f32 %v875, %v1073
    %v1075 = vsub.f32 1.0, %v1074
    %v1076 = vmul.f32 %v1073, %v1075
    %v1077 = vadd.f32 %v1073, %v1076
    %vm1078 = vweird.f32 %v875
    %vm1079 = vweird.f32 %v1073
    %vm1080 = vmor %vm1078, %vm1079
    %v1081 = vsel %vm1080, %v1073, %v1077
    %v1082 = vand.u32 2147483647, %v875
    %vm1083 = vcmp.eq.f32.partialorder %v1082, 8.507059e+37
    %v1084 = vand.u32 %v875, 2147483648
    %v1085 = vor.u32 1.1754944e-38, %v1084
    %v1086 = vsel %vm1083, %v1085, %v1081
    %v1087 = vmul.f32 1.0, %v1086
    %v1088 = vrcp.pop %v876
    %v1089 = vmul.f32 %v876, %v1088
    %v1090 = vsub.f32 1.0, %v1089
    %v1091 = vmul.f32 %v1088, %v1090
    %v1092 = vadd.f32 %v1088, %v1091
    %vm1093 = vweird.f32 %v876
    %vm1094 = vweird.f32 %v1088
    %vm1095 = vmor %vm1093, %vm1094
    %v1096 = vsel %vm1095, %v1088, %v1092
    %v1097 = vand.u32 2147483647, %v876
    %vm1098 = vcmp.eq.f32.partialorder %v1097, 8.507059e+37
    %v1099 = vand.u32 %v876, 2147483648
    %v1100 = vor.u32 1.1754944e-38, %v1099
    %v1101 = vsel %vm1098, %v1100, %v1096
    %v1102 = vmul.f32 1.0, %v1101
    %v1103 = vrcp.pop %v877
    %v1104 = vmul.f32 %v877, %v1103
    %v1105 = vsub.f32 1.0, %v1104
    %v1106 = vmul.f32 %v1103, %v1105
    %v1107 = vadd.f32 %v1103, %v1106
    %vm1108 = vweird.f32 %v877
    %vm1109 = vweird.f32 %v1103
    %vm1110 = vmor %vm1108, %vm1109
    %v1111 = vsel %vm1110, %v1103, %v1107
    %v1112 = vand.u32 2147483647, %v877
    %vm1113 = vcmp.eq.f32.partialorder %v1112, 8.507059e+37
    %v1114 = vand.u32 %v877, 2147483648
    %v1115 = vor.u32 1.1754944e-38, %v1114
    %v1116 = vsel %vm1113, %v1115, %v1111
    %v1117 = vmul.f32 1.0, %v1116
    %1134 = vrot.lane.b32.xlu0 %v751, 64
    %v1135 = vpop.permute.xlu0 %1134
    %1136 = vrot.lane.b32.xlu0 %v754, 64
    %v1137 = vpop.permute.xlu0 %1136
    %1138 = vrot.lane.b32.xlu0 %v757, 64
    %v1139 = vpop.permute.xlu0 %1138
    %1140 = vrot.lane.b32.xlu0 %v760, 64
    %v1141 = vpop.permute.xlu0 %1140
    %1142 = vrot.lane.b32.xlu0 %v763, 64
    %v1143 = vpop.permute.xlu0 %1142
    %1144 = vrot.lane.b32.xlu0 %v766, 64
    %v1145 = vpop.permute.xlu0 %1144
    %1146 = vrot.lane.b32.xlu0 %v769, 64
    %v1147 = vpop.permute.xlu0 %1146
    %1148 = vrot.lane.b32.xlu0 %v772, 64
    %v1149 = vpop.permute.xlu0 %1148
    %1150 = vrot.lane.b32.xlu0 %v775, 64
    %v1151 = vpop.permute.xlu0 %1150
    %1152 = vrot.lane.b32.xlu0 %v778, 64
    %v1153 = vpop.permute.xlu0 %1152
    %1154 = vrot.lane.b32.xlu0 %v781, 64
    %v1155 = vpop.permute.xlu0 %1154
    %1156 = vrot.lane.b32.xlu0 %v784, 64
    %v1157 = vpop.permute.xlu0 %1156
    %1158 = vrot.lane.b32.xlu0 %v787, 64
    %v1159 = vpop.permute.xlu0 %1158
    %1160 = vrot.lane.b32.xlu0 %v790, 64
    %v1161 = vpop.permute.xlu0 %1160
    %1162 = vrot.lane.b32.xlu0 %v793, 64
    %v1163 = vpop.permute.xlu0 %1162
    %1164 = vrot.lane.b32.xlu0 %v796, 64
    %v1165 = vpop.permute.xlu0 %1164
    %v1182 = vmul.f32 %v892, %v1135
    %v1183 = vmul.f32 %v907, %v1137
    %v1184 = vmul.f32 %v922, %v1139
    %v1185 = vmul.f32 %v937, %v1141
    %v1186 = vmul.f32 %v952, %v1143
    %v1187 = vmul.f32 %v967, %v1145
    %v1188 = vmul.f32 %v982, %v1147
    %v1189 = vmul.f32 %v997, %v1149
    %v1190 = vmul.f32 %v1012, %v1151
    %v1191 = vmul.f32 %v1027, %v1153
    %v1192 = vmul.f32 %v1042, %v1155
    %v1193 = vmul.f32 %v1057, %v1157
    %v1194 = vmul.f32 %v1072, %v1159
    %v1195 = vmul.f32 %v1087, %v1161
    %v1196 = vmul.f32 %v1102, %v1163
    %v1197 = vmul.f32 %v1117, %v1165
    %1214 = vrot.lane.b32.xlu0 %v1182, 64
    %v1215 = vpop.permute.xlu0 %1214
    %1216 = vrot.lane.b32.xlu0 %v1183, 64
    %v1217 = vpop.permute.xlu0 %1216
    %1218 = vrot.lane.b32.xlu0 %v1184, 64
    %v1219 = vpop.permute.xlu0 %1218
    %1220 = vrot.lane.b32.xlu0 %v1185, 64
    %v1221 = vpop.permute.xlu0 %1220
    %1222 = vrot.lane.b32.xlu0 %v1186, 64
    %v1223 = vpop.permute.xlu0 %1222
    %1224 = vrot.lane.b32.xlu0 %v1187, 64
    %v1225 = vpop.permute.xlu0 %1224
    %1226 = vrot.lane.b32.xlu0 %v1188, 64
    %v1227 = vpop.permute.xlu0 %1226
    %1228 = vrot.lane.b32.xlu0 %v1189, 64
    %v1229 = vpop.permute.xlu0 %1228
    %1230 = vrot.lane.b32.xlu0 %v1190, 64
    %v1231 = vpop.permute.xlu0 %1230
    %1232 = vrot.lane.b32.xlu0 %v1191, 64
    %v1233 = vpop.permute.xlu0 %1232
    %1234 = vrot.lane.b32.xlu0 %v1192, 64
    %v1235 = vpop.permute.xlu0 %1234
    %1236 = vrot.lane.b32.xlu0 %v1193, 64
    %v1237 = vpop.permute.xlu0 %1236
    %1238 = vrot.lane.b32.xlu0 %v1194, 64
    %v1239 = vpop.permute.xlu0 %1238
    %1240 = vrot.lane.b32.xlu0 %v1195, 64
    %v1241 = vpop.permute.xlu0 %1240
    %1242 = vrot.lane.b32.xlu0 %v1196, 64
    %v1243 = vpop.permute.xlu0 %1242
    %1244 = vrot.lane.b32.xlu0 %v1197, 64
    %v1245 = vpop.permute.xlu0 %1244
    %v1262 = vadd.f32 %v714, %v1215
    %v1263 = vadd.f32 %v715, %v1217
    %v1264 = vadd.f32 %v716, %v1219
    %v1265 = vadd.f32 %v717, %v1221
    %v1266 = vadd.f32 %v718, %v1223
    %v1267 = vadd.f32 %v719, %v1225
    %v1268 = vadd.f32 %v720, %v1227
    %v1269 = vadd.f32 %v721, %v1229
    %v1270 = vadd.f32 %v722, %v1231
    %v1271 = vadd.f32 %v723, %v1233
    %v1272 = vadd.f32 %v724, %v1235
    %v1273 = vadd.f32 %v725, %v1237
    %v1274 = vadd.f32 %v726, %v1239
    %v1275 = vadd.f32 %v727, %v1241
    %v1276 = vadd.f32 %v728, %v1243
    %v1277 = vadd.f32 %v729, %v1245
    %v1278 = vtanh.pop %v1262
    %v1279 = vtanh.pop %v1263
    %v1280 = vtanh.pop %v1264
    %v1281 = vtanh.pop %v1265
    %v1282 = vtanh.pop %v1266
    %v1283 = vtanh.pop %v1267
    %v1284 = vtanh.pop %v1268
    %v1285 = vtanh.pop %v1269
    %v1286 = vtanh.pop %v1270
    %v1287 = vtanh.pop %v1271
    %v1288 = vtanh.pop %v1272
    %v1289 = vtanh.pop %v1273
    %v1290 = vtanh.pop %v1274
    %v1291 = vtanh.pop %v1275
    %v1292 = vtanh.pop %v1276
    %v1293 = vtanh.pop %v1277
    %1310 = vrot.lane.b32.xlu0 %v1278, 64
    %v1311 = vpop.permute.xlu0 %1310
    %1312 = vrot.lane.b32.xlu0 %v1279, 64
    %v1313 = vpop.permute.xlu0 %1312
    %1314 = vrot.lane.b32.xlu0 %v1280, 64
    %v1315 = vpop.permute.xlu0 %1314
    %1316 = vrot.lane.b32.xlu0 %v1281, 64
    %v1317 = vpop.permute.xlu0 %1316
    %1318 = vrot.lane.b32.xlu0 %v1282, 64
    %v1319 = vpop.permute.xlu0 %1318
    %1320 = vrot.lane.b32.xlu0 %v1283, 64
    %v1321 = vpop.permute.xlu0 %1320
    %1322 = vrot.lane.b32.xlu0 %v1284, 64
    %v1323 = vpop.permute.xlu0 %1322
    %1324 = vrot.lane.b32.xlu0 %v1285, 64
    %v1325 = vpop.permute.xlu0 %1324
    %1326 = vrot.lane.b32.xlu0 %v1286, 64
    %v1327 = vpop.permute.xlu0 %1326
    %1328 = vrot.lane.b32.xlu0 %v1287, 64
    %v1329 = vpop.permute.xlu0 %1328
    %1330 = vrot.lane.b32.xlu0 %v1288, 64
    %v1331 = vpop.permute.xlu0 %1330
    %1332 = vrot.lane.b32.xlu0 %v1289, 64
    %v1333 = vpop.permute.xlu0 %1332
    %1334 = vrot.lane.b32.xlu0 %v1290, 64
    %v1335 = vpop.permute.xlu0 %1334
    %1336 = vrot.lane.b32.xlu0 %v1291, 64
    %v1337 = vpop.permute.xlu0 %1336
    %1338 = vrot.lane.b32.xlu0 %v1292, 64
    %v1339 = vpop.permute.xlu0 %1338
    %1340 = vrot.lane.b32.xlu0 %v1293, 64
    %v1341 = vpop.permute.xlu0 %1340
    %v1358 = vsub.f32 %v156, %v1311
    %v1359 = vsub.f32 %v157, %v1313
    %v1360 = vsub.f32 %v158, %v1315
    %v1361 = vsub.f32 %v159, %v1317
    %v1362 = vsub.f32 %v160, %v1319
    %v1363 = vsub.f32 %v161, %v1321
    %v1364 = vsub.f32 %v162, %v1323
    %v1365 = vsub.f32 %v163, %v1325
    %v1366 = vsub.f32 %v164, %v1327
    %v1367 = vsub.f32 %v165, %v1329
    %v1368 = vsub.f32 %v166, %v1331
    %v1369 = vsub.f32 %v167, %v1333
    %v1370 = vsub.f32 %v168, %v1335
    %v1371 = vsub.f32 %v169, %v1337
    %v1372 = vsub.f32 %v170, %v1339
    %v1373 = vsub.f32 %v171, %v1341
    %1390 = vrot.lane.b32.xlu0 %v1358, 32
    %v1391 = vpop.permute.xlu0 %1390
    %1392 = vrot.lane.b32.xlu0 %v1359, 32
    %v1393 = vpop.permute.xlu0 %1392
    %1394 = vrot.lane.b32.xlu0 %v1360, 32
    %v1395 = vpop.permute.xlu0 %1394
    %1396 = vrot.lane.b32.xlu0 %v1361, 32
    %v1397 = vpop.permute.xlu0 %1396
    %1398 = vrot.lane.b32.xlu0 %v1362, 32
    %v1399 = vpop.permute.xlu0 %1398
    %1400 = vrot.lane.b32.xlu0 %v1363, 32
    %v1401 = vpop.permute.xlu0 %1400
    %1402 = vrot.lane.b32.xlu0 %v1364, 32
    %v1403 = vpop.permute.xlu0 %1402
    %1404 = vrot.lane.b32.xlu0 %v1365, 32
    %v1405 = vpop.permute.xlu0 %1404
    %1406 = vrot.lane.b32.xlu0 %v1366, 32
    %v1407 = vpop.permute.xlu0 %1406
    %1408 = vrot.lane.b32.xlu0 %v1367, 32
    %v1409 = vpop.permute.xlu0 %1408
    %1410 = vrot.lane.b32.xlu0 %v1368, 32
    %v1411 = vpop.permute.xlu0 %1410
    %1412 = vrot.lane.b32.xlu0 %v1369, 32
    %v1413 = vpop.permute.xlu0 %1412
    %1414 = vrot.lane.b32.xlu0 %v1370, 32
    %v1415 = vpop.permute.xlu0 %1414
    %1416 = vrot.lane.b32.xlu0 %v1371, 32
    %v1417 = vpop.permute.xlu0 %1416
    %1418 = vrot.lane.b32.xlu0 %v1372, 32
    %v1419 = vpop.permute.xlu0 %1418
    %1420 = vrot.lane.b32.xlu0 %v1373, 32
    %v1421 = vpop.permute.xlu0 %1420
    %v1438 = vmul.f32 %v892, %v1391
    %v1439 = vmul.f32 %v907, %v1393
    %v1440 = vmul.f32 %v922, %v1395
    %v1441 = vmul.f32 %v937, %v1397
    %v1442 = vmul.f32 %v952, %v1399
    %v1443 = vmul.f32 %v967, %v1401
    %v1444 = vmul.f32 %v982, %v1403
    %v1445 = vmul.f32 %v997, %v1405
    %v1446 = vmul.f32 %v1012, %v1407
    %v1447 = vmul.f32 %v1027, %v1409
    %v1448 = vmul.f32 %v1042, %v1411
    %v1449 = vmul.f32 %v1057, %v1413
    %v1450 = vmul.f32 %v1072, %v1415
    %v1451 = vmul.f32 %v1087, %v1417
    %v1452 = vmul.f32 %v1102, %v1419
    %v1453 = vmul.f32 %v1117, %v1421
    %1470 = vrot.lane.b32.xlu0 %v1438, 96
    %v1471 = vpop.permute.xlu0 %1470
    %1472 = vrot.lane.b32.xlu0 %v1439, 96
    %v1473 = vpop.permute.xlu0 %1472
    %1474 = vrot.lane.b32.xlu0 %v1440, 96
    %v1475 = vpop.permute.xlu0 %1474
    %1476 = vrot.lane.b32.xlu0 %v1441, 96
    %v1477 = vpop.permute.xlu0 %1476
    %1478 = vrot.lane.b32.xlu0 %v1442, 96
    %v1479 = vpop.permute.xlu0 %1478
    %1480 = vrot.lane.b32.xlu0 %v1443, 96
    %v1481 = vpop.permute.xlu0 %1480
    %1482 = vrot.lane.b32.xlu0 %v1444, 96
    %v1483 = vpop.permute.xlu0 %1482
    %1484 = vrot.lane.b32.xlu0 %v1445, 96
    %v1485 = vpop.permute.xlu0 %1484
    %1486 = vrot.lane.b32.xlu0 %v1446, 96
    %v1487 = vpop.permute.xlu0 %1486
    %1488 = vrot.lane.b32.xlu0 %v1447, 96
    %v1489 = vpop.permute.xlu0 %1488
    %1490 = vrot.lane.b32.xlu0 %v1448, 96
    %v1491 = vpop.permute.xlu0 %1490
    %1492 = vrot.lane.b32.xlu0 %v1449, 96
    %v1493 = vpop.permute.xlu0 %1492
    %1494 = vrot.lane.b32.xlu0 %v1450, 96
    %v1495 = vpop.permute.xlu0 %1494
    %1496 = vrot.lane.b32.xlu0 %v1451, 96
    %v1497 = vpop.permute.xlu0 %1496
    %1498 = vrot.lane.b32.xlu0 %v1452, 96
    %v1499 = vpop.permute.xlu0 %1498
    %1500 = vrot.lane.b32.xlu0 %v1453, 96
    %v1501 = vpop.permute.xlu0 %1500
    %v1518 = vsub.f32 %v156, %v1471
    %v1519 = vsub.f32 %v157, %v1473
    %v1520 = vsub.f32 %v158, %v1475
    %v1521 = vsub.f32 %v159, %v1477
    %v1522 = vsub.f32 %v160, %v1479
    %v1523 = vsub.f32 %v161, %v1481
    %v1524 = vsub.f32 %v162, %v1483
    %v1525 = vsub.f32 %v163, %v1485
    %v1526 = vsub.f32 %v164, %v1487
    %v1527 = vsub.f32 %v165, %v1489
    %v1528 = vsub.f32 %v166, %v1491
    %v1529 = vsub.f32 %v167, %v1493
    %v1530 = vsub.f32 %v168, %v1495
    %v1531 = vsub.f32 %v169, %v1497
    %v1532 = vsub.f32 %v170, %v1499
    %v1533 = vsub.f32 %v171, %v1501
    %v1535 = vsel %vm173, %v1518, 0
    %v1538 = vsel %vm173, %v1519, 0
    %v1541 = vsel %vm173, %v1520, 0
    %v1544 = vsel %vm173, %v1521, 0
    %v1547 = vsel %vm173, %v1522, 0
    %v1550 = vsel %vm173, %v1523, 0
    %v1553 = vsel %vm173, %v1524, 0
    %v1556 = vsel %vm173, %v1525, 0
    %v1559 = vsel %vm173, %v1526, 0
    %v1562 = vsel %vm173, %v1527, 0
    %v1565 = vsel %vm173, %v1528, 0
    %v1568 = vsel %vm173, %v1529, 0
    %v1571 = vsel %vm173, %v1530, 0
    %v1574 = vsel %vm173, %v1531, 0
    %v1577 = vsel %vm173, %v1532, 0
    %v1580 = vsel %vm173, %v1533, 0
    %1582 = vmatpush.msra.mxu0 0.0
    %1583 = vmatpush.msra.mxu0 0.0
    %1584 = vmatpush.msra.mxu0 0.0
    %1585 = vmatpush.msra.mxu0 0.0
    %1586 = vmatpush.msra.mxu0 0.0
    %1587 = vmatpush.msra.mxu0 0.0
    %1588 = vmatpush.msra.mxu0 0.0
    %1589 = vmatpush.msra.mxu0 0.0
    %1590 = vmatpush.msra.mxu0 0.0
    %1591 = vmatpush.msra.mxu0 0.0
    %1592 = vmatpush.msra.mxu0 0.0
    %1593 = vmatpush.msra.mxu0 0.0
    %1594 = vmatpush.msra.mxu0 %v131
    %1595 = vmatpush.msra.mxu0 %v130
    %1596 = vmatpush.msra.mxu0 %v129
    %1597 = vmatpush.msra.mxu0 %v128
    %1598 = vmatmul.f32.gmra.mxu0 %v1535
    %v1599 = vpop.f32.mrf.mxu0
    %v1600 = vadd.f32 %v172, %v1599
    %1601 = vmatmul.f32.gmra.mxu0 %v1538
    %v1602 = vpop.f32.mrf.mxu0
    %v1603 = vadd.f32 %v172, %v1602
    %1604 = vmatmul.f32.gmra.mxu0 %v1541
    %v1605 = vpop.f32.mrf.mxu0
    %v1606 = vadd.f32 %v172, %v1605
    %1607 = vmatmul.f32.gmra.mxu0 %v1544
    %v1608 = vpop.f32.mrf.mxu0
    %v1609 = vadd.f32 %v172, %v1608
    %1610 = vmatmul.f32.gmra.mxu0 %v1547
    %v1611 = vpop.f32.mrf.mxu0
    %v1612 = vadd.f32 %v172, %v1611
    %1613 = vmatmul.f32.gmra.mxu0 %v1550
    %v1614 = vpop.f32.mrf.mxu0
    %v1615 = vadd.f32 %v172, %v1614
    %1616 = vmatmul.f32.gmra.mxu0 %v1553
    %v1617 = vpop.f32.mrf.mxu0
    %v1618 = vadd.f32 %v172, %v1617
    %1619 = vmatmul.f32.gmra.mxu0 %v1556
    %v1620 = vpop.f32.mrf.mxu0
    %v1621 = vadd.f32 %v172, %v1620
    %1622 = vmatmul.f32.gmra.mxu0 %v1559
    %v1623 = vpop.f32.mrf.mxu0
    %v1624 = vadd.f32 %v172, %v1623
    %1625 = vmatmul.f32.gmra.mxu0 %v1562
    %v1626 = vpop.f32.mrf.mxu0
    %v1627 = vadd.f32 %v172, %v1626
    %1628 = vmatmul.f32.gmra.mxu0 %v1565
    %v1629 = vpop.f32.mrf.mxu0
    %v1630 = vadd.f32 %v172, %v1629
    %1631 = vmatmul.f32.gmra.mxu0 %v1568
    %v1632 = vpop.f32.mrf.mxu0
    %v1633 = vadd.f32 %v172, %v1632
    %1634 = vmatmul.f32.gmra.mxu0 %v1571
    %v1635 = vpop.f32.mrf.mxu0
    %v1636 = vadd.f32 %v172, %v1635
    %1637 = vmatmul.f32.gmra.mxu0 %v1574
    %v1638 = vpop.f32.mrf.mxu0
    %v1639 = vadd.f32 %v172, %v1638
    %1640 = vmatmul.f32.gmra.mxu0 %v1577
    %v1641 = vpop.f32.mrf.mxu0
    %v1642 = vadd.f32 %v172, %v1641
    %1643 = vmatmul.f32.gmra.mxu0 %v1580
    %v1644 = vpop.f32.mrf.mxu0
    %v1645 = vadd.f32 %v172, %v1644
    %1646 = vdwg.mxu0
    %1647 = vmatpush.msra.mxu0 0.0
    %1648 = vmatpush.msra.mxu0 0.0
    %1649 = vmatpush.msra.mxu0 0.0
    %1650 = vmatpush.msra.mxu0 0.0
    %1651 = vmatpush.msra.mxu0 0.0
    %1652 = vmatpush.msra.mxu0 0.0
    %1653 = vmatpush.msra.mxu0 0.0
    %1654 = vmatpush.msra.mxu0 0.0
    %1655 = vmatpush.msra.mxu0 0.0
    %1656 = vmatpush.msra.mxu0 0.0
    %1657 = vmatpush.msra.mxu0 0.0
    %1658 = vmatpush.msra.mxu0 0.0
    %1659 = vmatpush.msra.mxu0 %v136
    %1660 = vmatpush.msra.mxu0 %v135
    %1661 = vmatpush.msra.mxu0 %v134
    %1662 = vmatpush.msra.mxu0 %v133
    %1663 = vmatmul.f32.gmra.mxu0 %v1535
    %v1664 = vpop.f32.mrf.mxu0
    %v1665 = vadd.f32 %v287, %v1664
    %1666 = vmatmul.f32.gmra.mxu0 %v1538
    %v1667 = vpop.f32.mrf.mxu0
    %v1668 = vadd.f32 %v287, %v1667
    %1669 = vmatmul.f32.gmra.mxu0 %v1541
    %v1670 = vpop.f32.mrf.mxu0
    %v1671 = vadd.f32 %v287, %v1670
    %1672 = vmatmul.f32.gmra.mxu0 %v1544
    %v1673 = vpop.f32.mrf.mxu0
    %v1674 = vadd.f32 %v287, %v1673
    %1675 = vmatmul.f32.gmra.mxu0 %v1547
    %v1676 = vpop.f32.mrf.mxu0
    %v1677 = vadd.f32 %v287, %v1676
    %1678 = vmatmul.f32.gmra.mxu0 %v1550
    %v1679 = vpop.f32.mrf.mxu0
    %v1680 = vadd.f32 %v287, %v1679
    %1681 = vmatmul.f32.gmra.mxu0 %v1553
    %v1682 = vpop.f32.mrf.mxu0
    %v1683 = vadd.f32 %v287, %v1682
    %1684 = vmatmul.f32.gmra.mxu0 %v1556
    %v1685 = vpop.f32.mrf.mxu0
    %v1686 = vadd.f32 %v287, %v1685
    %1687 = vmatmul.f32.gmra.mxu0 %v1559
    %v1688 = vpop.f32.mrf.mxu0
    %v1689 = vadd.f32 %v287, %v1688
    %1690 = vmatmul.f32.gmra.mxu0 %v1562
    %v1691 = vpop.f32.mrf.mxu0
    %v1692 = vadd.f32 %v287, %v1691
    %1693 = vmatmul.f32.gmra.mxu0 %v1565
    %v1694 = vpop.f32.mrf.mxu0
    %v1695 = vadd.f32 %v287, %v1694
    %1696 = vmatmul.f32.gmra.mxu0 %v1568
    %v1697 = vpop.f32.mrf.mxu0
    %v1698 = vadd.f32 %v287, %v1697
    %1699 = vmatmul.f32.gmra.mxu0 %v1571
    %v1700 = vpop.f32.mrf.mxu0
    %v1701 = vadd.f32 %v287, %v1700
    %1702 = vmatmul.f32.gmra.mxu0 %v1574
    %v1703 = vpop.f32.mrf.mxu0
    %v1704 = vadd.f32 %v287, %v1703
    %1705 = vmatmul.f32.gmra.mxu0 %v1577
    %v1706 = vpop.f32.mrf.mxu0
    %v1707 = vadd.f32 %v287, %v1706
    %1708 = vmatmul.f32.gmra.mxu0 %v1580
    %v1709 = vpop.f32.mrf.mxu0
    %v1710 = vadd.f32 %v287, %v1709
    %1711 = vdwg.mxu0
    %1712 = vmatpush.msra.mxu0 %v1645
    %1713 = vmatpush.msra.mxu0 %v1642
    %1714 = vmatpush.msra.mxu0 %v1639
    %1715 = vmatpush.msra.mxu0 %v1636
    %1716 = vmatpush.msra.mxu0 %v1633
    %1717 = vmatpush.msra.mxu0 %v1630
    %1718 = vmatpush.msra.mxu0 %v1627
    %1719 = vmatpush.msra.mxu0 %v1624
    %1720 = vmatpush.msra.mxu0 %v1621
    %1721 = vmatpush.msra.mxu0 %v1618
    %1722 = vmatpush.msra.mxu0 %v1615
    %1723 = vmatpush.msra.mxu0 %v1612
    %1724 = vmatpush.msra.mxu0 %v1609
    %1725 = vmatpush.msra.mxu0 %v1606
    %1726 = vmatpush.msra.mxu0 %v1603
    %1727 = vmatpush.msra.mxu0 %v1600
    %1728 = vmatmul.f32.gmra.mxu0 %v96
    %v1729 = vpop.f32.mrf.mxu0
    %v1730 = vadd.f32 %v353, %v1729
    %1731 = vmatmul.f32.gmra.mxu0 %v97
    %v1732 = vpop.f32.mrf.mxu0
    %v1733 = vadd.f32 %v353, %v1732
    %1734 = vmatmul.f32.gmra.mxu0 %v98
    %v1735 = vpop.f32.mrf.mxu0
    %v1736 = vadd.f32 %v353, %v1735
    %1737 = vmatmul.f32.gmra.mxu0 %v99
    %v1738 = vpop.f32.mrf.mxu0
    %v1739 = vadd.f32 %v353, %v1738
    %1740 = vmatmul.f32.gmra.mxu0 %v100
    %v1741 = vpop.f32.mrf.mxu0
    %v1742 = vadd.f32 %v353, %v1741
    %1743 = vmatmul.f32.gmra.mxu0 %v101
    %v1744 = vpop.f32.mrf.mxu0
    %v1745 = vadd.f32 %v353, %v1744
    %1746 = vmatmul.f32.gmra.mxu0 %v102
    %v1747 = vpop.f32.mrf.mxu0
    %v1748 = vadd.f32 %v353, %v1747
    %1749 = vmatmul.f32.gmra.mxu0 %v103
    %v1750 = vpop.f32.mrf.mxu0
    %v1751 = vadd.f32 %v353, %v1750
    %1752 = vmatmul.f32.gmra.mxu0 %v104
    %v1753 = vpop.f32.mrf.mxu0
    %v1754 = vadd.f32 %v353, %v1753
    %1755 = vmatmul.f32.gmra.mxu0 %v105
    %v1756 = vpop.f32.mrf.mxu0
    %v1757 = vadd.f32 %v353, %v1756
    %1758 = vmatmul.f32.gmra.mxu0 %v106
    %v1759 = vpop.f32.mrf.mxu0
    %v1760 = vadd.f32 %v353, %v1759
    %1761 = vmatmul.f32.gmra.mxu0 %v107
    %v1762 = vpop.f32.mrf.mxu0
    %v1763 = vadd.f32 %v353, %v1762
    %1764 = vmatmul.f32.gmra.mxu0 %v108
    %v1765 = vpop.f32.mrf.mxu0
    %v1766 = vadd.f32 %v353, %v1765
    %1767 = vmatmul.f32.gmra.mxu0 %v109
    %v1768 = vpop.f32.mrf.mxu0
    %v1769 = vadd.f32 %v353, %v1768
    %1770 = vmatmul.f32.gmra.mxu0 %v110
    %v1771 = vpop.f32.mrf.mxu0
    %v1772 = vadd.f32 %v353, %v1771
    %1773 = vmatmul.f32.gmra.mxu0 %v111
    %v1774 = vpop.f32.mrf.mxu0
    %v1775 = vadd.f32 %v353, %v1774
    %1776 = vdwg.mxu0
    %1777 = vmatpush.msra.mxu0 %v1710
    %1778 = vmatpush.msra.mxu0 %v1707
    %1779 = vmatpush.msra.mxu0 %v1704
    %1780 = vmatpush.msra.mxu0 %v1701
    %1781 = vmatpush.msra.mxu0 %v1698
    %1782 = vmatpush.msra.mxu0 %v1695
    %1783 = vmatpush.msra.mxu0 %v1692
    %1784 = vmatpush.msra.mxu0 %v1689
    %1785 = vmatpush.msra.mxu0 %v1686
    %1786 = vmatpush.msra.mxu0 %v1683
    %1787 = vmatpush.msra.mxu0 %v1680
    %1788 = vmatpush.msra.mxu0 %v1677
    %1789 = vmatpush.msra.mxu0 %v1674
    %1790 = vmatpush.msra.mxu0 %v1671
    %1791 = vmatpush.msra.mxu0 %v1668
    %1792 = vmatpush.msra.mxu0 %v1665
    %1793 = vmatmul.f32.gmra.mxu0 %v112
    %v1794 = vpop.f32.mrf.mxu0
    %v1795 = vadd.f32 %v419, %v1794
    %1796 = vmatmul.f32.gmra.mxu0 %v113
    %v1797 = vpop.f32.mrf.mxu0
    %v1798 = vadd.f32 %v419, %v1797
    %1799 = vmatmul.f32.gmra.mxu0 %v114
    %v1800 = vpop.f32.mrf.mxu0
    %v1801 = vadd.f32 %v419, %v1800
    %1802 = vmatmul.f32.gmra.mxu0 %v115
    %v1803 = vpop.f32.mrf.mxu0
    %v1804 = vadd.f32 %v419, %v1803
    %1805 = vmatmul.f32.gmra.mxu0 %v116
    %v1806 = vpop.f32.mrf.mxu0
    %v1807 = vadd.f32 %v419, %v1806
    %1808 = vmatmul.f32.gmra.mxu0 %v117
    %v1809 = vpop.f32.mrf.mxu0
    %v1810 = vadd.f32 %v419, %v1809
    %1811 = vmatmul.f32.gmra.mxu0 %v118
    %v1812 = vpop.f32.mrf.mxu0
    %v1813 = vadd.f32 %v419, %v1812
    %1814 = vmatmul.f32.gmra.mxu0 %v119
    %v1815 = vpop.f32.mrf.mxu0
    %v1816 = vadd.f32 %v419, %v1815
    %1817 = vmatmul.f32.gmra.mxu0 %v120
    %v1818 = vpop.f32.mrf.mxu0
    %v1819 = vadd.f32 %v419, %v1818
    %1820 = vmatmul.f32.gmra.mxu0 %v121
    %v1821 = vpop.f32.mrf.mxu0
    %v1822 = vadd.f32 %v419, %v1821
    %1823 = vmatmul.f32.gmra.mxu0 %v122
    %v1824 = vpop.f32.mrf.mxu0
    %v1825 = vadd.f32 %v419, %v1824
    %1826 = vmatmul.f32.gmra.mxu0 %v123
    %v1827 = vpop.f32.mrf.mxu0
    %v1828 = vadd.f32 %v419, %v1827
    %1829 = vmatmul.f32.gmra.mxu0 %v124
    %v1830 = vpop.f32.mrf.mxu0
    %v1831 = vadd.f32 %v419, %v1830
    %1832 = vmatmul.f32.gmra.mxu0 %v125
    %v1833 = vpop.f32.mrf.mxu0
    %v1834 = vadd.f32 %v419, %v1833
    %1835 = vmatmul.f32.gmra.mxu0 %v126
    %v1836 = vpop.f32.mrf.mxu0
    %v1837 = vadd.f32 %v419, %v1836
    %1838 = vmatmul.f32.gmra.mxu0 %v127
    %v1839 = vpop.f32.mrf.mxu0
    %v1840 = vadd.f32 %v419, %v1839
    %1841 = vdwg.mxu0
    %v1843 = vsel %vm173, %v1795, 0
    %v1846 = vsel %vm173, %v1798, 0
    %v1849 = vsel %vm173, %v1801, 0
    %v1852 = vsel %vm173, %v1804, 0
    %v1855 = vsel %vm173, %v1807, 0
    %v1858 = vsel %vm173, %v1810, 0
    %v1861 = vsel %vm173, %v1813, 0
    %v1864 = vsel %vm173, %v1816, 0
    %v1867 = vsel %vm173, %v1819, 0
    %v1870 = vsel %vm173, %v1822, 0
    %v1873 = vsel %vm173, %v1825, 0
    %v1876 = vsel %vm173, %v1828, 0
    %v1879 = vsel %vm173, %v1831, 0
    %v1882 = vsel %vm173, %v1834, 0
    %v1885 = vsel %vm173, %v1837, 0
    %v1888 = vsel %vm173, %v1840, 0
    %1890 = vmatpush.msra.mxu0 0.0
    %1891 = vmatpush.msra.mxu0 0.0
    %1892 = vmatpush.msra.mxu0 0.0
    %1893 = vmatpush.msra.mxu0 0.0
    %1894 = vmatpush.msra.mxu0 0.0
    %1895 = vmatpush.msra.mxu0 0.0
    %1896 = vmatpush.msra.mxu0 0.0
    %1897 = vmatpush.msra.mxu0 0.0
    %1898 = vmatpush.msra.mxu0 0.0
    %1899 = vmatpush.msra.mxu0 0.0
    %1900 = vmatpush.msra.mxu0 0.0
    %1901 = vmatpush.msra.mxu0 0.0
    %1902 = vmatpush.msra.mxu0 %v149
    %1903 = vmatpush.msra.mxu0 %v148
    %1904 = vmatpush.msra.mxu0 %v147
    %1905 = vmatpush.msra.mxu0 %v146
    %1906 = vmatmul.f32.gmra.mxu0 %v1843
    %v1907 = vpop.f32.mrf.mxu0
    %v1908 = vadd.f32 0.0, %v1907
    %1909 = vmatmul.f32.gmra.mxu0 %v1846
    %v1910 = vpop.f32.mrf.mxu0
    %v1911 = vadd.f32 0.0, %v1910
    %1912 = vmatmul.f32.gmra.mxu0 %v1849
    %v1913 = vpop.f32.mrf.mxu0
    %v1914 = vadd.f32 0.0, %v1913
    %1915 = vmatmul.f32.gmra.mxu0 %v1852
    %v1916 = vpop.f32.mrf.mxu0
    %v1917 = vadd.f32 0.0, %v1916
    %1918 = vmatmul.f32.gmra.mxu0 %v1855
    %v1919 = vpop.f32.mrf.mxu0
    %v1920 = vadd.f32 0.0, %v1919
    %1921 = vmatmul.f32.gmra.mxu0 %v1858
    %v1922 = vpop.f32.mrf.mxu0
    %v1923 = vadd.f32 0.0, %v1922
    %1924 = vmatmul.f32.gmra.mxu0 %v1861
    %v1925 = vpop.f32.mrf.mxu0
    %v1926 = vadd.f32 0.0, %v1925
    %1927 = vmatmul.f32.gmra.mxu0 %v1864
    %v1928 = vpop.f32.mrf.mxu0
    %v1929 = vadd.f32 0.0, %v1928
    %1930 = vmatmul.f32.gmra.mxu0 %v1867
    %v1931 = vpop.f32.mrf.mxu0
    %v1932 = vadd.f32 0.0, %v1931
    %1933 = vmatmul.f32.gmra.mxu0 %v1870
    %v1934 = vpop.f32.mrf.mxu0
    %v1935 = vadd.f32 0.0, %v1934
    %1936 = vmatmul.f32.gmra.mxu0 %v1873
    %v1937 = vpop.f32.mrf.mxu0
    %v1938 = vadd.f32 0.0, %v1937
    %1939 = vmatmul.f32.gmra.mxu0 %v1876
    %v1940 = vpop.f32.mrf.mxu0
    %v1941 = vadd.f32 0.0, %v1940
    %1942 = vmatmul.f32.gmra.mxu0 %v1879
    %v1943 = vpop.f32.mrf.mxu0
    %v1944 = vadd.f32 0.0, %v1943
    %1945 = vmatmul.f32.gmra.mxu0 %v1882
    %v1946 = vpop.f32.mrf.mxu0
    %v1947 = vadd.f32 0.0, %v1946
    %1948 = vmatmul.f32.gmra.mxu0 %v1885
    %v1949 = vpop.f32.mrf.mxu0
    %v1950 = vadd.f32 0.0, %v1949
    %1951 = vmatmul.f32.gmra.mxu0 %v1888
    %v1952 = vpop.f32.mrf.mxu0
    %v1953 = vadd.f32 0.0, %v1952
    %1954 = vdwg.mxu0
    %v1956 = vsel %vm173, %v1730, 0
    %v1959 = vsel %vm173, %v1733, 0
    %v1962 = vsel %vm173, %v1736, 0
    %v1965 = vsel %vm173, %v1739, 0
    %v1968 = vsel %vm173, %v1742, 0
    %v1971 = vsel %vm173, %v1745, 0
    %v1974 = vsel %vm173, %v1748, 0
    %v1977 = vsel %vm173, %v1751, 0
    %v1980 = vsel %vm173, %v1754, 0
    %v1983 = vsel %vm173, %v1757, 0
    %v1986 = vsel %vm173, %v1760, 0
    %v1989 = vsel %vm173, %v1763, 0
    %v1992 = vsel %vm173, %v1766, 0
    %v1995 = vsel %vm173, %v1769, 0
    %v1998 = vsel %vm173, %v1772, 0
    %v2001 = vsel %vm173, %v1775, 0
    %2003 = vmatpush.msra.mxu0 0.0
    %2004 = vmatpush.msra.mxu0 0.0
    %2005 = vmatpush.msra.mxu0 0.0
    %2006 = vmatpush.msra.mxu0 0.0
    %2007 = vmatpush.msra.mxu0 0.0
    %2008 = vmatpush.msra.mxu0 0.0
    %2009 = vmatpush.msra.mxu0 0.0
    %2010 = vmatpush.msra.mxu0 0.0
    %2011 = vmatpush.msra.mxu0 0.0
    %2012 = vmatpush.msra.mxu0 0.0
    %2013 = vmatpush.msra.mxu0 0.0
    %2014 = vmatpush.msra.mxu0 0.0
    %2015 = vmatpush.msra.mxu0 %v144
    %2016 = vmatpush.msra.mxu0 %v143
    %2017 = vmatpush.msra.mxu0 %v142
    %2018 = vmatpush.msra.mxu0 %v141
    %2019 = vmatmul.f32.gmra.mxu0 %v1956
    %v2020 = vpop.f32.mrf.mxu0
    %v2021 = vadd.f32 %v1908, %v2020
    %2022 = vmatmul.f32.gmra.mxu0 %v1959
    %v2023 = vpop.f32.mrf.mxu0
    %v2024 = vadd.f32 %v1911, %v2023
    %2025 = vmatmul.f32.gmra.mxu0 %v1962
    %v2026 = vpop.f32.mrf.mxu0
    %v2027 = vadd.f32 %v1914, %v2026
    %2028 = vmatmul.f32.gmra.mxu0 %v1965
    %v2029 = vpop.f32.mrf.mxu0
    %v2030 = vadd.f32 %v1917, %v2029
    %2031 = vmatmul.f32.gmra.mxu0 %v1968
    %v2032 = vpop.f32.mrf.mxu0
    %v2033 = vadd.f32 %v1920, %v2032
    %2034 = vmatmul.f32.gmra.mxu0 %v1971
    %v2035 = vpop.f32.mrf.mxu0
    %v2036 = vadd.f32 %v1923, %v2035
    %2037 = vmatmul.f32.gmra.mxu0 %v1974
    %v2038 = vpop.f32.mrf.mxu0
    %v2039 = vadd.f32 %v1926, %v2038
    %2040 = vmatmul.f32.gmra.mxu0 %v1977
    %v2041 = vpop.f32.mrf.mxu0
    %v2042 = vadd.f32 %v1929, %v2041
    %2043 = vmatmul.f32.gmra.mxu0 %v1980
    %v2044 = vpop.f32.mrf.mxu0
    %v2045 = vadd.f32 %v1932, %v2044
    %2046 = vmatmul.f32.gmra.mxu0 %v1983
    %v2047 = vpop.f32.mrf.mxu0
    %v2048 = vadd.f32 %v1935, %v2047
    %2049 = vmatmul.f32.gmra.mxu0 %v1986
    %v2050 = vpop.f32.mrf.mxu0
    %v2051 = vadd.f32 %v1938, %v2050
    %2052 = vmatmul.f32.gmra.mxu0 %v1989
    %v2053 = vpop.f32.mrf.mxu0
    %v2054 = vadd.f32 %v1941, %v2053
    %2055 = vmatmul.f32.gmra.mxu0 %v1992
    %v2056 = vpop.f32.mrf.mxu0
    %v2057 = vadd.f32 %v1944, %v2056
    %2058 = vmatmul.f32.gmra.mxu0 %v1995
    %v2059 = vpop.f32.mrf.mxu0
    %v2060 = vadd.f32 %v1947, %v2059
    %2061 = vmatmul.f32.gmra.mxu0 %v1998
    %v2062 = vpop.f32.mrf.mxu0
    %v2063 = vadd.f32 %v1950, %v2062
    %2064 = vmatmul.f32.gmra.mxu0 %v2001
    %v2065 = vpop.f32.mrf.mxu0
    %v2066 = vadd.f32 %v1953, %v2065
    %2067 = vdwg.mxu0
    %v2068 = vadd.f32 %v2021, %v712
    %v2069 = vadd.f32 %v2024, %v712
    %v2070 = vadd.f32 %v2027, %v712
    %v2071 = vadd.f32 %v2030, %v712
    %v2072 = vadd.f32 %v2033, %v712
    %v2073 = vadd.f32 %v2036, %v712
    %v2074 = vadd.f32 %v2039, %v712
    %v2075 = vadd.f32 %v2042, %v712
    %v2076 = vadd.f32 %v2045, %v712
    %v2077 = vadd.f32 %v2048, %v712
    %v2078 = vadd.f32 %v2051, %v712
    %v2079 = vadd.f32 %v2054, %v712
    %v2080 = vadd.f32 %v2057, %v712
    %v2081 = vadd.f32 %v2060, %v712
    %v2082 = vadd.f32 %v2063, %v712
    %v2083 = vadd.f32 %v2066, %v712
    %2084 = vmatpush.msra.mxu0 0.0
    %2085 = vmatpush.msra.mxu0 0.0
    %2086 = vmatpush.msra.mxu0 0.0
    %2087 = vmatpush.msra.mxu0 0.0
    %2088 = vmatpush.msra.mxu0 0.0
    %2089 = vmatpush.msra.mxu0 0.0
    %2090 = vmatpush.msra.mxu0 0.0
    %2091 = vmatpush.msra.mxu0 0.0
    %2092 = vmatpush.msra.mxu0 0.0
    %2093 = vmatpush.msra.mxu0 0.0
    %2094 = vmatpush.msra.mxu0 0.0
    %2095 = vmatpush.msra.mxu0 0.0
    %2096 = vmatpush.msra.mxu0 %v153
    %2097 = vmatpush.msra.mxu0 %v152
    %2098 = vmatpush.msra.mxu0 %v151
    %2099 = vmatpush.msra.mxu0 %v150
    %2100 = vmatmul.f32.gmra.mxu0 %v1535
    %v2101 = vpop.f32.mrf.mxu0
    %v2102 = vadd.f32 %v731, %v2101
    %2103 = vmatmul.f32.gmra.mxu0 %v1538
    %v2104 = vpop.f32.mrf.mxu0
    %v2105 = vadd.f32 %v731, %v2104
    %2106 = vmatmul.f32.gmra.mxu0 %v1541
    %v2107 = vpop.f32.mrf.mxu0
    %v2108 = vadd.f32 %v731, %v2107
    %2109 = vmatmul.f32.gmra.mxu0 %v1544
    %v2110 = vpop.f32.mrf.mxu0
    %v2111 = vadd.f32 %v731, %v2110
    %2112 = vmatmul.f32.gmra.mxu0 %v1547
    %v2113 = vpop.f32.mrf.mxu0
    %v2114 = vadd.f32 %v731, %v2113
    %2115 = vmatmul.f32.gmra.mxu0 %v1550
    %v2116 = vpop.f32.mrf.mxu0
    %v2117 = vadd.f32 %v731, %v2116
    %2118 = vmatmul.f32.gmra.mxu0 %v1553
    %v2119 = vpop.f32.mrf.mxu0
    %v2120 = vadd.f32 %v731, %v2119
    %2121 = vmatmul.f32.gmra.mxu0 %v1556
    %v2122 = vpop.f32.mrf.mxu0
    %v2123 = vadd.f32 %v731, %v2122
    %2124 = vmatmul.f32.gmra.mxu0 %v1559
    %v2125 = vpop.f32.mrf.mxu0
    %v2126 = vadd.f32 %v731, %v2125
    %2127 = vmatmul.f32.gmra.mxu0 %v1562
    %v2128 = vpop.f32.mrf.mxu0
    %v2129 = vadd.f32 %v731, %v2128
    %2130 = vmatmul.f32.gmra.mxu0 %v1565
    %v2131 = vpop.f32.mrf.mxu0
    %v2132 = vadd.f32 %v731, %v2131
    %2133 = vmatmul.f32.gmra.mxu0 %v1568
    %v2134 = vpop.f32.mrf.mxu0
    %v2135 = vadd.f32 %v731, %v2134
    %2136 = vmatmul.f32.gmra.mxu0 %v1571
    %v2137 = vpop.f32.mrf.mxu0
    %v2138 = vadd.f32 %v731, %v2137
    %2139 = vmatmul.f32.gmra.mxu0 %v1574
    %v2140 = vpop.f32.mrf.mxu0
    %v2141 = vadd.f32 %v731, %v2140
    %2142 = vmatmul.f32.gmra.mxu0 %v1577
    %v2143 = vpop.f32.mrf.mxu0
    %v2144 = vadd.f32 %v731, %v2143
    %2145 = vmatmul.f32.gmra.mxu0 %v1580
    %v2146 = vpop.f32.mrf.mxu0
    %v2147 = vadd.f32 %v731, %v2146
    %2148 = vdwg.mxu0
    %v2149 = vadd.f32 %v2068, %v2102
    %v2150 = vadd.f32 %v2069, %v2105
    %v2151 = vadd.f32 %v2070, %v2108
    %v2152 = vadd.f32 %v2071, %v2111
    %v2153 = vadd.f32 %v2072, %v2114
    %v2154 = vadd.f32 %v2073, %v2117
    %v2155 = vadd.f32 %v2074, %v2120
    %v2156 = vadd.f32 %v2075, %v2123
    %v2157 = vadd.f32 %v2076, %v2126
    %v2158 = vadd.f32 %v2077, %v2129
    %v2159 = vadd.f32 %v2078, %v2132
    %v2160 = vadd.f32 %v2079, %v2135
    %v2161 = vadd.f32 %v2080, %v2138
    %v2162 = vadd.f32 %v2081, %v2141
    %v2163 = vadd.f32 %v2082, %v2144
    %v2164 = vadd.f32 %v2083, %v2147
    %v2165 = vxor.u32 %v2149, 2147483648
    %v2166 = vxor.u32 %v2150, 2147483648
    %v2167 = vxor.u32 %v2151, 2147483648
    %v2168 = vxor.u32 %v2152, 2147483648
    %v2169 = vxor.u32 %v2153, 2147483648
    %v2170 = vxor.u32 %v2154, 2147483648
    %v2171 = vxor.u32 %v2155, 2147483648
    %v2172 = vxor.u32 %v2156, 2147483648
    %v2173 = vxor.u32 %v2157, 2147483648
    %v2174 = vxor.u32 %v2158, 2147483648
    %v2175 = vxor.u32 %v2159, 2147483648
    %v2176 = vxor.u32 %v2160, 2147483648
    %v2177 = vxor.u32 %v2161, 2147483648
    %v2178 = vxor.u32 %v2162, 2147483648
    %v2179 = vxor.u32 %v2163, 2147483648
    %v2180 = vxor.u32 %v2164, 2147483648
    %v2181 = vmul.f32 %v2165, 1.442695
    %v2182 = vpow.pop %v2181
    %v2183 = vmul.f32 %v2166, 1.442695
    %v2184 = vpow.pop %v2183
    %v2185 = vmul.f32 %v2167, 1.442695
    %v2186 = vpow.pop %v2185
    %v2187 = vmul.f32 %v2168, 1.442695
    %v2188 = vpow.pop %v2187
    %v2189 = vmul.f32 %v2169, 1.442695
    %v2190 = vpow.pop %v2189
    %v2191 = vmul.f32 %v2170, 1.442695
    %v2192 = vpow.pop %v2191
    %v2193 = vmul.f32 %v2171, 1.442695
    %v2194 = vpow.pop %v2193
    %v2195 = vmul.f32 %v2172, 1.442695
    %v2196 = vpow.pop %v2195
    %v2197 = vmul.f32 %v2173, 1.442695
    %v2198 = vpow.pop %v2197
    %v2199 = vmul.f32 %v2174, 1.442695
    %v2200 = vpow.pop %v2199
    %v2201 = vmul.f32 %v2175, 1.442695
    %v2202 = vpow.pop %v2201
    %v2203 = vmul.f32 %v2176, 1.442695
    %v2204 = vpow.pop %v2203
    %v2205 = vmul.f32 %v2177, 1.442695
    %v2206 = vpow.pop %v2205
    %v2207 = vmul.f32 %v2178, 1.442695
    %v2208 = vpow.pop %v2207
    %v2209 = vmul.f32 %v2179, 1.442695
    %v2210 = vpow.pop %v2209
    %v2211 = vmul.f32 %v2180, 1.442695
    %v2212 = vpow.pop %v2211
    %v2213 = vadd.f32 %v2182, 1.0
    %v2214 = vadd.f32 %v2184, 1.0
    %v2215 = vadd.f32 %v2186, 1.0
    %v2216 = vadd.f32 %v2188, 1.0
    %v2217 = vadd.f32 %v2190, 1.0
    %v2218 = vadd.f32 %v2192, 1.0
    %v2219 = vadd.f32 %v2194, 1.0
    %v2220 = vadd.f32 %v2196, 1.0
    %v2221 = vadd.f32 %v2198, 1.0
    %v2222 = vadd.f32 %v2200, 1.0
    %v2223 = vadd.f32 %v2202, 1.0
    %v2224 = vadd.f32 %v2204, 1.0
    %v2225 = vadd.f32 %v2206, 1.0
    %v2226 = vadd.f32 %v2208, 1.0
    %v2227 = vadd.f32 %v2210, 1.0
    %v2228 = vadd.f32 %v2212, 1.0
    %v2229 = vrcp.pop %v2213
    %v2230 = vmul.f32 %v2213, %v2229
    %v2231 = vsub.f32 1.0, %v2230
    %v2232 = vmul.f32 %v2229, %v2231
    %v2233 = vadd.f32 %v2229, %v2232
    %vm2234 = vweird.f32 %v2213
    %vm2235 = vweird.f32 %v2229
    %vm2236 = vmor %vm2234, %vm2235
    %v2237 = vsel %vm2236, %v2229, %v2233
    %v2238 = vand.u32 2147483647, %v2213
    %vm2239 = vcmp.eq.f32.partialorder %v2238, 8.507059e+37
    %v2240 = vand.u32 %v2213, 2147483648
    %v2241 = vor.u32 1.1754944e-38, %v2240
    %v2242 = vsel %vm2239, %v2241, %v2237
    %v2243 = vmul.f32 1.0, %v2242
    %v2244 = vrcp.pop %v2214
    %v2245 = vmul.f32 %v2214, %v2244
    %v2246 = vsub.f32 1.0, %v2245
    %v2247 = vmul.f32 %v2244, %v2246
    %v2248 = vadd.f32 %v2244, %v2247
    %vm2249 = vweird.f32 %v2214
    %vm2250 = vweird.f32 %v2244
    %vm2251 = vmor %vm2249, %vm2250
    %v2252 = vsel %vm2251, %v2244, %v2248
    %v2253 = vand.u32 2147483647, %v2214
    %vm2254 = vcmp.eq.f32.partialorder %v2253, 8.507059e+37
    %v2255 = vand.u32 %v2214, 2147483648
    %v2256 = vor.u32 1.1754944e-38, %v2255
    %v2257 = vsel %vm2254, %v2256, %v2252
    %v2258 = vmul.f32 1.0, %v2257
    %v2259 = vrcp.pop %v2215
    %v2260 = vmul.f32 %v2215, %v2259
    %v2261 = vsub.f32 1.0, %v2260
    %v2262 = vmul.f32 %v2259, %v2261
    %v2263 = vadd.f32 %v2259, %v2262
    %vm2264 = vweird.f32 %v2215
    %vm2265 = vweird.f32 %v2259
    %vm2266 = vmor %vm2264, %vm2265
    %v2267 = vsel %vm2266, %v2259, %v2263
    %v2268 = vand.u32 2147483647, %v2215
    %vm2269 = vcmp.eq.f32.partialorder %v2268, 8.507059e+37
    %v2270 = vand.u32 %v2215, 2147483648
    %v2271 = vor.u32 1.1754944e-38, %v2270
    %v2272 = vsel %vm2269, %v2271, %v2267
    %v2273 = vmul.f32 1.0, %v2272
    %v2274 = vrcp.pop %v2216
    %v2275 = vmul.f32 %v2216, %v2274
    %v2276 = vsub.f32 1.0, %v2275
    %v2277 = vmul.f32 %v2274, %v2276
    %v2278 = vadd.f32 %v2274, %v2277
    %vm2279 = vweird.f32 %v2216
    %vm2280 = vweird.f32 %v2274
    %vm2281 = vmor %vm2279, %vm2280
    %v2282 = vsel %vm2281, %v2274, %v2278
    %v2283 = vand.u32 2147483647, %v2216
    %vm2284 = vcmp.eq.f32.partialorder %v2283, 8.507059e+37
    %v2285 = vand.u32 %v2216, 2147483648
    %v2286 = vor.u32 1.1754944e-38, %v2285
    %v2287 = vsel %vm2284, %v2286, %v2282
    %v2288 = vmul.f32 1.0, %v2287
    %v2289 = vrcp.pop %v2217
    %v2290 = vmul.f32 %v2217, %v2289
    %v2291 = vsub.f32 1.0, %v2290
    %v2292 = vmul.f32 %v2289, %v2291
    %v2293 = vadd.f32 %v2289, %v2292
    %vm2294 = vweird.f32 %v2217
    %vm2295 = vweird.f32 %v2289
    %vm2296 = vmor %vm2294, %vm2295
    %v2297 = vsel %vm2296, %v2289, %v2293
    %v2298 = vand.u32 2147483647, %v2217
    %vm2299 = vcmp.eq.f32.partialorder %v2298, 8.507059e+37
    %v2300 = vand.u32 %v2217, 2147483648
    %v2301 = vor.u32 1.1754944e-38, %v2300
    %v2302 = vsel %vm2299, %v2301, %v2297
    %v2303 = vmul.f32 1.0, %v2302
    %v2304 = vrcp.pop %v2218
    %v2305 = vmul.f32 %v2218, %v2304
    %v2306 = vsub.f32 1.0, %v2305
    %v2307 = vmul.f32 %v2304, %v2306
    %v2308 = vadd.f32 %v2304, %v2307
    %vm2309 = vweird.f32 %v2218
    %vm2310 = vweird.f32 %v2304
    %vm2311 = vmor %vm2309, %vm2310
    %v2312 = vsel %vm2311, %v2304, %v2308
    %v2313 = vand.u32 2147483647, %v2218
    %vm2314 = vcmp.eq.f32.partialorder %v2313, 8.507059e+37
    %v2315 = vand.u32 %v2218, 2147483648
    %v2316 = vor.u32 1.1754944e-38, %v2315
    %v2317 = vsel %vm2314, %v2316, %v2312
    %v2318 = vmul.f32 1.0, %v2317
    %v2319 = vrcp.pop %v2219
    %v2320 = vmul.f32 %v2219, %v2319
    %v2321 = vsub.f32 1.0, %v2320
    %v2322 = vmul.f32 %v2319, %v2321
    %v2323 = vadd.f32 %v2319, %v2322
    %vm2324 = vweird.f32 %v2219
    %vm2325 = vweird.f32 %v2319
    %vm2326 = vmor %vm2324, %vm2325
    %v2327 = vsel %vm2326, %v2319, %v2323
    %v2328 = vand.u32 2147483647, %v2219
    %vm2329 = vcmp.eq.f32.partialorder %v2328, 8.507059e+37
    %v2330 = vand.u32 %v2219, 2147483648
    %v2331 = vor.u32 1.1754944e-38, %v2330
    %v2332 = vsel %vm2329, %v2331, %v2327
    %v2333 = vmul.f32 1.0, %v2332
    %v2334 = vrcp.pop %v2220
    %v2335 = vmul.f32 %v2220, %v2334
    %v2336 = vsub.f32 1.0, %v2335
    %v2337 = vmul.f32 %v2334, %v2336
    %v2338 = vadd.f32 %v2334, %v2337
    %vm2339 = vweird.f32 %v2220
    %vm2340 = vweird.f32 %v2334
    %vm2341 = vmor %vm2339, %vm2340
    %v2342 = vsel %vm2341, %v2334, %v2338
    %v2343 = vand.u32 2147483647, %v2220
    %vm2344 = vcmp.eq.f32.partialorder %v2343, 8.507059e+37
    %v2345 = vand.u32 %v2220, 2147483648
    %v2346 = vor.u32 1.1754944e-38, %v2345
    %v2347 = vsel %vm2344, %v2346, %v2342
    %v2348 = vmul.f32 1.0, %v2347
    %v2349 = vrcp.pop %v2221
    %v2350 = vmul.f32 %v2221, %v2349
    %v2351 = vsub.f32 1.0, %v2350
    %v2352 = vmul.f32 %v2349, %v2351
    %v2353 = vadd.f32 %v2349, %v2352
    %vm2354 = vweird.f32 %v2221
    %vm2355 = vweird.f32 %v2349
    %vm2356 = vmor %vm2354, %vm2355
    %v2357 = vsel %vm2356, %v2349, %v2353
    %v2358 = vand.u32 2147483647, %v2221
    %vm2359 = vcmp.eq.f32.partialorder %v2358, 8.507059e+37
    %v2360 = vand.u32 %v2221, 2147483648
    %v2361 = vor.u32 1.1754944e-38, %v2360
    %v2362 = vsel %vm2359, %v2361, %v2357
    %v2363 = vmul.f32 1.0, %v2362
    %v2364 = vrcp.pop %v2222
    %v2365 = vmul.f32 %v2222, %v2364
    %v2366 = vsub.f32 1.0, %v2365
    %v2367 = vmul.f32 %v2364, %v2366
    %v2368 = vadd.f32 %v2364, %v2367
    %vm2369 = vweird.f32 %v2222
    %vm2370 = vweird.f32 %v2364
    %vm2371 = vmor %vm2369, %vm2370
    %v2372 = vsel %vm2371, %v2364, %v2368
    %v2373 = vand.u32 2147483647, %v2222
    %vm2374 = vcmp.eq.f32.partialorder %v2373, 8.507059e+37
    %v2375 = vand.u32 %v2222, 2147483648
    %v2376 = vor.u32 1.1754944e-38, %v2375
    %v2377 = vsel %vm2374, %v2376, %v2372
    %v2378 = vmul.f32 1.0, %v2377
    %v2379 = vrcp.pop %v2223
    %v2380 = vmul.f32 %v2223, %v2379
    %v2381 = vsub.f32 1.0, %v2380
    %v2382 = vmul.f32 %v2379, %v2381
    %v2383 = vadd.f32 %v2379, %v2382
    %vm2384 = vweird.f32 %v2223
    %vm2385 = vweird.f32 %v2379
    %vm2386 = vmor %vm2384, %vm2385
    %v2387 = vsel %vm2386, %v2379, %v2383
    %v2388 = vand.u32 2147483647, %v2223
    %vm2389 = vcmp.eq.f32.partialorder %v2388, 8.507059e+37
    %v2390 = vand.u32 %v2223, 2147483648
    %v2391 = vor.u32 1.1754944e-38, %v2390
    %v2392 = vsel %vm2389, %v2391, %v2387
    %v2393 = vmul.f32 1.0, %v2392
    %v2394 = vrcp.pop %v2224
    %v2395 = vmul.f32 %v2224, %v2394
    %v2396 = vsub.f32 1.0, %v2395
    %v2397 = vmul.f32 %v2394, %v2396
    %v2398 = vadd.f32 %v2394, %v2397
    %vm2399 = vweird.f32 %v2224
    %vm2400 = vweird.f32 %v2394
    %vm2401 = vmor %vm2399, %vm2400
    %v2402 = vsel %vm2401, %v2394, %v2398
    %v2403 = vand.u32 2147483647, %v2224
    %vm2404 = vcmp.eq.f32.partialorder %v2403, 8.507059e+37
    %v2405 = vand.u32 %v2224, 2147483648
    %v2406 = vor.u32 1.1754944e-38, %v2405
    %v2407 = vsel %vm2404, %v2406, %v2402
    %v2408 = vmul.f32 1.0, %v2407
    %v2409 = vrcp.pop %v2225
    %v2410 = vmul.f32 %v2225, %v2409
    %v2411 = vsub.f32 1.0, %v2410
    %v2412 = vmul.f32 %v2409, %v2411
    %v2413 = vadd.f32 %v2409, %v2412
    %vm2414 = vweird.f32 %v2225
    %vm2415 = vweird.f32 %v2409
    %vm2416 = vmor %vm2414, %vm2415
    %v2417 = vsel %vm2416, %v2409, %v2413
    %v2418 = vand.u32 2147483647, %v2225
    %vm2419 = vcmp.eq.f32.partialorder %v2418, 8.507059e+37
    %v2420 = vand.u32 %v2225, 2147483648
    %v2421 = vor.u32 1.1754944e-38, %v2420
    %v2422 = vsel %vm2419, %v2421, %v2417
    %v2423 = vmul.f32 1.0, %v2422
    %v2424 = vrcp.pop %v2226
    %v2425 = vmul.f32 %v2226, %v2424
    %v2426 = vsub.f32 1.0, %v2425
    %v2427 = vmul.f32 %v2424, %v2426
    %v2428 = vadd.f32 %v2424, %v2427
    %vm2429 = vweird.f32 %v2226
    %vm2430 = vweird.f32 %v2424
    %vm2431 = vmor %vm2429, %vm2430
    %v2432 = vsel %vm2431, %v2424, %v2428
    %v2433 = vand.u32 2147483647, %v2226
    %vm2434 = vcmp.eq.f32.partialorder %v2433, 8.507059e+37
    %v2435 = vand.u32 %v2226, 2147483648
    %v2436 = vor.u32 1.1754944e-38, %v2435
    %v2437 = vsel %vm2434, %v2436, %v2432
    %v2438 = vmul.f32 1.0, %v2437
    %v2439 = vrcp.pop %v2227
    %v2440 = vmul.f32 %v2227, %v2439
    %v2441 = vsub.f32 1.0, %v2440
    %v2442 = vmul.f32 %v2439, %v2441
    %v2443 = vadd.f32 %v2439, %v2442
    %vm2444 = vweird.f32 %v2227
    %vm2445 = vweird.f32 %v2439
    %vm2446 = vmor %vm2444, %vm2445
    %v2447 = vsel %vm2446, %v2439, %v2443
    %v2448 = vand.u32 2147483647, %v2227
    %vm2449 = vcmp.eq.f32.partialorder %v2448, 8.507059e+37
    %v2450 = vand.u32 %v2227, 2147483648
    %v2451 = vor.u32 1.1754944e-38, %v2450
    %v2452 = vsel %vm2449, %v2451, %v2447
    %v2453 = vmul.f32 1.0, %v2452
    %v2454 = vrcp.pop %v2228
    %v2455 = vmul.f32 %v2228, %v2454
    %v2456 = vsub.f32 1.0, %v2455
    %v2457 = vmul.f32 %v2454, %v2456
    %v2458 = vadd.f32 %v2454, %v2457
    %vm2459 = vweird.f32 %v2228
    %vm2460 = vweird.f32 %v2454
    %vm2461 = vmor %vm2459, %vm2460
    %v2462 = vsel %vm2461, %v2454, %v2458
    %v2463 = vand.u32 2147483647, %v2228
    %vm2464 = vcmp.eq.f32.partialorder %v2463, 8.507059e+37
    %v2465 = vand.u32 %v2228, 2147483648
    %v2466 = vor.u32 1.1754944e-38, %v2465
    %v2467 = vsel %vm2464, %v2466, %v2462
    %v2468 = vmul.f32 1.0, %v2467
    %2485 = vrot.lane.b32.xlu0 %v2102, 64
    %v2486 = vpop.permute.xlu0 %2485
    %2487 = vrot.lane.b32.xlu0 %v2105, 64
    %v2488 = vpop.permute.xlu0 %2487
    %2489 = vrot.lane.b32.xlu0 %v2108, 64
    %v2490 = vpop.permute.xlu0 %2489
    %2491 = vrot.lane.b32.xlu0 %v2111, 64
    %v2492 = vpop.permute.xlu0 %2491
    %2493 = vrot.lane.b32.xlu0 %v2114, 64
    %v2494 = vpop.permute.xlu0 %2493
    %2495 = vrot.lane.b32.xlu0 %v2117, 64
    %v2496 = vpop.permute.xlu0 %2495
    %2497 = vrot.lane.b32.xlu0 %v2120, 64
    %v2498 = vpop.permute.xlu0 %2497
    %2499 = vrot.lane.b32.xlu0 %v2123, 64
    %v2500 = vpop.permute.xlu0 %2499
    %2501 = vrot.lane.b32.xlu0 %v2126, 64
    %v2502 = vpop.permute.xlu0 %2501
    %2503 = vrot.lane.b32.xlu0 %v2129, 64
    %v2504 = vpop.permute.xlu0 %2503
    %2505 = vrot.lane.b32.xlu0 %v2132, 64
    %v2506 = vpop.permute.xlu0 %2505
    %2507 = vrot.lane.b32.xlu0 %v2135, 64
    %v2508 = vpop.permute.xlu0 %2507
    %2509 = vrot.lane.b32.xlu0 %v2138, 64
    %v2510 = vpop.permute.xlu0 %2509
    %2511 = vrot.lane.b32.xlu0 %v2141, 64
    %v2512 = vpop.permute.xlu0 %2511
    %2513 = vrot.lane.b32.xlu0 %v2144, 64
    %v2514 = vpop.permute.xlu0 %2513
    %2515 = vrot.lane.b32.xlu0 %v2147, 64
    %v2516 = vpop.permute.xlu0 %2515
    %v2533 = vmul.f32 %v2243, %v2486
    %v2534 = vmul.f32 %v2258, %v2488
    %v2535 = vmul.f32 %v2273, %v2490
    %v2536 = vmul.f32 %v2288, %v2492
    %v2537 = vmul.f32 %v2303, %v2494
    %v2538 = vmul.f32 %v2318, %v2496
    %v2539 = vmul.f32 %v2333, %v2498
    %v2540 = vmul.f32 %v2348, %v2500
    %v2541 = vmul.f32 %v2363, %v2502
    %v2542 = vmul.f32 %v2378, %v2504
    %v2543 = vmul.f32 %v2393, %v2506
    %v2544 = vmul.f32 %v2408, %v2508
    %v2545 = vmul.f32 %v2423, %v2510
    %v2546 = vmul.f32 %v2438, %v2512
    %v2547 = vmul.f32 %v2453, %v2514
    %v2548 = vmul.f32 %v2468, %v2516
    %2565 = vrot.lane.b32.xlu0 %v2533, 64
    %v2566 = vpop.permute.xlu0 %2565
    %2567 = vrot.lane.b32.xlu0 %v2534, 64
    %v2568 = vpop.permute.xlu0 %2567
    %2569 = vrot.lane.b32.xlu0 %v2535, 64
    %v2570 = vpop.permute.xlu0 %2569
    %2571 = vrot.lane.b32.xlu0 %v2536, 64
    %v2572 = vpop.permute.xlu0 %2571
    %2573 = vrot.lane.b32.xlu0 %v2537, 64
    %v2574 = vpop.permute.xlu0 %2573
    %2575 = vrot.lane.b32.xlu0 %v2538, 64
    %v2576 = vpop.permute.xlu0 %2575
    %2577 = vrot.lane.b32.xlu0 %v2539, 64
    %v2578 = vpop.permute.xlu0 %2577
    %2579 = vrot.lane.b32.xlu0 %v2540, 64
    %v2580 = vpop.permute.xlu0 %2579
    %2581 = vrot.lane.b32.xlu0 %v2541, 64
    %v2582 = vpop.permute.xlu0 %2581
    %2583 = vrot.lane.b32.xlu0 %v2542, 64
    %v2584 = vpop.permute.xlu0 %2583
    %2585 = vrot.lane.b32.xlu0 %v2543, 64
    %v2586 = vpop.permute.xlu0 %2585
    %2587 = vrot.lane.b32.xlu0 %v2544, 64
    %v2588 = vpop.permute.xlu0 %2587
    %2589 = vrot.lane.b32.xlu0 %v2545, 64
    %v2590 = vpop.permute.xlu0 %2589
    %2591 = vrot.lane.b32.xlu0 %v2546, 64
    %v2592 = vpop.permute.xlu0 %2591
    %2593 = vrot.lane.b32.xlu0 %v2547, 64
    %v2594 = vpop.permute.xlu0 %2593
    %2595 = vrot.lane.b32.xlu0 %v2548, 64
    %v2596 = vpop.permute.xlu0 %2595
    %v2613 = vadd.f32 %v2068, %v2566
    %v2614 = vadd.f32 %v2069, %v2568
    %v2615 = vadd.f32 %v2070, %v2570
    %v2616 = vadd.f32 %v2071, %v2572
    %v2617 = vadd.f32 %v2072, %v2574
    %v2618 = vadd.f32 %v2073, %v2576
    %v2619 = vadd.f32 %v2074, %v2578
    %v2620 = vadd.f32 %v2075, %v2580
    %v2621 = vadd.f32 %v2076, %v2582
    %v2622 = vadd.f32 %v2077, %v2584
    %v2623 = vadd.f32 %v2078, %v2586
    %v2624 = vadd.f32 %v2079, %v2588
    %v2625 = vadd.f32 %v2080, %v2590
    %v2626 = vadd.f32 %v2081, %v2592
    %v2627 = vadd.f32 %v2082, %v2594
    %v2628 = vadd.f32 %v2083, %v2596
    %v2629 = vtanh.pop %v2613
    %v2630 = vtanh.pop %v2614
    %v2631 = vtanh.pop %v2615
    %v2632 = vtanh.pop %v2616
    %v2633 = vtanh.pop %v2617
    %v2634 = vtanh.pop %v2618
    %v2635 = vtanh.pop %v2619
    %v2636 = vtanh.pop %v2620
    %v2637 = vtanh.pop %v2621
    %v2638 = vtanh.pop %v2622
    %v2639 = vtanh.pop %v2623
    %v2640 = vtanh.pop %v2624
    %v2641 = vtanh.pop %v2625
    %v2642 = vtanh.pop %v2626
    %v2643 = vtanh.pop %v2627
    %v2644 = vtanh.pop %v2628
    %2661 = vrot.lane.b32.xlu0 %v2629, 64
    %v2662 = vpop.permute.xlu0 %2661
    %2663 = vrot.lane.b32.xlu0 %v2630, 64
    %v2664 = vpop.permute.xlu0 %2663
    %2665 = vrot.lane.b32.xlu0 %v2631, 64
    %v2666 = vpop.permute.xlu0 %2665
    %2667 = vrot.lane.b32.xlu0 %v2632, 64
    %v2668 = vpop.permute.xlu0 %2667
    %2669 = vrot.lane.b32.xlu0 %v2633, 64
    %v2670 = vpop.permute.xlu0 %2669
    %2671 = vrot.lane.b32.xlu0 %v2634, 64
    %v2672 = vpop.permute.xlu0 %2671
    %2673 = vrot.lane.b32.xlu0 %v2635, 64
    %v2674 = vpop.permute.xlu0 %2673
    %2675 = vrot.lane.b32.xlu0 %v2636, 64
    %v2676 = vpop.permute.xlu0 %2675
    %2677 = vrot.lane.b32.xlu0 %v2637, 64
    %v2678 = vpop.permute.xlu0 %2677
    %2679 = vrot.lane.b32.xlu0 %v2638, 64
    %v2680 = vpop.permute.xlu0 %2679
    %2681 = vrot.lane.b32.xlu0 %v2639, 64
    %v2682 = vpop.permute.xlu0 %2681
    %2683 = vrot.lane.b32.xlu0 %v2640, 64
    %v2684 = vpop.permute.xlu0 %2683
    %2685 = vrot.lane.b32.xlu0 %v2641, 64
    %v2686 = vpop.permute.xlu0 %2685
    %2687 = vrot.lane.b32.xlu0 %v2642, 64
    %v2688 = vpop.permute.xlu0 %2687
    %2689 = vrot.lane.b32.xlu0 %v2643, 64
    %v2690 = vpop.permute.xlu0 %2689
    %2691 = vrot.lane.b32.xlu0 %v2644, 64
    %v2692 = vpop.permute.xlu0 %2691
    %v2709 = vsub.f32 %v1518, %v2662
    %v2710 = vsub.f32 %v1519, %v2664
    %v2711 = vsub.f32 %v1520, %v2666
    %v2712 = vsub.f32 %v1521, %v2668
    %v2713 = vsub.f32 %v1522, %v2670
    %v2714 = vsub.f32 %v1523, %v2672
    %v2715 = vsub.f32 %v1524, %v2674
    %v2716 = vsub.f32 %v1525, %v2676
    %v2717 = vsub.f32 %v1526, %v2678
    %v2718 = vsub.f32 %v1527, %v2680
    %v2719 = vsub.f32 %v1528, %v2682
    %v2720 = vsub.f32 %v1529, %v2684
    %v2721 = vsub.f32 %v1530, %v2686
    %v2722 = vsub.f32 %v1531, %v2688
    %v2723 = vsub.f32 %v1532, %v2690
    %v2724 = vsub.f32 %v1533, %v2692
    %2741 = vrot.lane.b32.xlu0 %v2709, 32
    %v2742 = vpop.permute.xlu0 %2741
    %2743 = vrot.lane.b32.xlu0 %v2710, 32
    %v2744 = vpop.permute.xlu0 %2743
    %2745 = vrot.lane.b32.xlu0 %v2711, 32
    %v2746 = vpop.permute.xlu0 %2745
    %2747 = vrot.lane.b32.xlu0 %v2712, 32
    %v2748 = vpop.permute.xlu0 %2747
    %2749 = vrot.lane.b32.xlu0 %v2713, 32
    %v2750 = vpop.permute.xlu0 %2749
    %2751 = vrot.lane.b32.xlu0 %v2714, 32
    %v2752 = vpop.permute.xlu0 %2751
    %2753 = vrot.lane.b32.xlu0 %v2715, 32
    %v2754 = vpop.permute.xlu0 %2753
    %2755 = vrot.lane.b32.xlu0 %v2716, 32
    %v2756 = vpop.permute.xlu0 %2755
    %2757 = vrot.lane.b32.xlu0 %v2717, 32
    %v2758 = vpop.permute.xlu0 %2757
    %2759 = vrot.lane.b32.xlu0 %v2718, 32
    %v2760 = vpop.permute.xlu0 %2759
    %2761 = vrot.lane.b32.xlu0 %v2719, 32
    %v2762 = vpop.permute.xlu0 %2761
    %2763 = vrot.lane.b32.xlu0 %v2720, 32
    %v2764 = vpop.permute.xlu0 %2763
    %2765 = vrot.lane.b32.xlu0 %v2721, 32
    %v2766 = vpop.permute.xlu0 %2765
    %2767 = vrot.lane.b32.xlu0 %v2722, 32
    %v2768 = vpop.permute.xlu0 %2767
    %2769 = vrot.lane.b32.xlu0 %v2723, 32
    %v2770 = vpop.permute.xlu0 %2769
    %2771 = vrot.lane.b32.xlu0 %v2724, 32
    %v2772 = vpop.permute.xlu0 %2771
    %v2789 = vmul.f32 %v2243, %v2742
    %v2790 = vmul.f32 %v2258, %v2744
    %v2791 = vmul.f32 %v2273, %v2746
    %v2792 = vmul.f32 %v2288, %v2748
    %v2793 = vmul.f32 %v2303, %v2750
    %v2794 = vmul.f32 %v2318, %v2752
    %v2795 = vmul.f32 %v2333, %v2754
    %v2796 = vmul.f32 %v2348, %v2756
    %v2797 = vmul.f32 %v2363, %v2758
    %v2798 = vmul.f32 %v2378, %v2760
    %v2799 = vmul.f32 %v2393, %v2762
    %v2800 = vmul.f32 %v2408, %v2764
    %v2801 = vmul.f32 %v2423, %v2766
    %v2802 = vmul.f32 %v2438, %v2768
    %v2803 = vmul.f32 %v2453, %v2770
    %v2804 = vmul.f32 %v2468, %v2772
    %2821 = vrot.lane.b32.xlu0 %v2789, 96
    %v2822 = vpop.permute.xlu0 %2821
    %2823 = vrot.lane.b32.xlu0 %v2790, 96
    %v2824 = vpop.permute.xlu0 %2823
    %2825 = vrot.lane.b32.xlu0 %v2791, 96
    %v2826 = vpop.permute.xlu0 %2825
    %2827 = vrot.lane.b32.xlu0 %v2792, 96
    %v2828 = vpop.permute.xlu0 %2827
    %2829 = vrot.lane.b32.xlu0 %v2793, 96
    %v2830 = vpop.permute.xlu0 %2829
    %2831 = vrot.lane.b32.xlu0 %v2794, 96
    %v2832 = vpop.permute.xlu0 %2831
    %2833 = vrot.lane.b32.xlu0 %v2795, 96
    %v2834 = vpop.permute.xlu0 %2833
    %2835 = vrot.lane.b32.xlu0 %v2796, 96
    %v2836 = vpop.permute.xlu0 %2835
    %2837 = vrot.lane.b32.xlu0 %v2797, 96
    %v2838 = vpop.permute.xlu0 %2837
    %2839 = vrot.lane.b32.xlu0 %v2798, 96
    %v2840 = vpop.permute.xlu0 %2839
    %2841 = vrot.lane.b32.xlu0 %v2799, 96
    %v2842 = vpop.permute.xlu0 %2841
    %2843 = vrot.lane.b32.xlu0 %v2800, 96
    %v2844 = vpop.permute.xlu0 %2843
    %2845 = vrot.lane.b32.xlu0 %v2801, 96
    %v2846 = vpop.permute.xlu0 %2845
    %2847 = vrot.lane.b32.xlu0 %v2802, 96
    %v2848 = vpop.permute.xlu0 %2847
    %2849 = vrot.lane.b32.xlu0 %v2803, 96
    %v2850 = vpop.permute.xlu0 %2849
    %2851 = vrot.lane.b32.xlu0 %v2804, 96
    %v2852 = vpop.permute.xlu0 %2851
    %v2869 = vsub.f32 %v1518, %v2822
    %v2870 = vsub.f32 %v1519, %v2824
    %v2871 = vsub.f32 %v1520, %v2826
    %v2872 = vsub.f32 %v1521, %v2828
    %v2873 = vsub.f32 %v1522, %v2830
    %v2874 = vsub.f32 %v1523, %v2832
    %v2875 = vsub.f32 %v1524, %v2834
    %v2876 = vsub.f32 %v1525, %v2836
    %v2877 = vsub.f32 %v1526, %v2838
    %v2878 = vsub.f32 %v1527, %v2840
    %v2879 = vsub.f32 %v1528, %v2842
    %v2880 = vsub.f32 %v1529, %v2844
    %v2881 = vsub.f32 %v1530, %v2846
    %v2882 = vsub.f32 %v1531, %v2848
    %v2883 = vsub.f32 %v1532, %v2850
    %v2884 = vsub.f32 %v1533, %v2852
    %2885 = vst.msk [vmem:[%s10] sm:$0xff] %vm173, %v2869
    %2886 = vst.msk [vmem:[%s10 + $0x8] sm:$0xff] %vm173, %v2870
    %2887 = vst.msk [vmem:[%s10 + $0x10] sm:$0xff] %vm173, %v2871
    %2888 = vst.msk [vmem:[%s10 + $0x18] sm:$0xff] %vm173, %v2872
    %2889 = vst.msk [vmem:[%s10 + $0x20] sm:$0xff] %vm173, %v2873
    %2890 = vst.msk [vmem:[%s10 + $0x28] sm:$0xff] %vm173, %v2874
    %2891 = vst.msk [vmem:[%s10 + $0x30] sm:$0xff] %vm173, %v2875
    %2892 = vst.msk [vmem:[%s10 + $0x38] sm:$0xff] %vm173, %v2876
    %2893 = vst.msk [vmem:[%s10 + $0x40] sm:$0xff] %vm173, %v2877
    %2894 = vst.msk [vmem:[%s10 + $0x48] sm:$0xff] %vm173, %v2878
    %2895 = vst.msk [vmem:[%s10 + $0x50] sm:$0xff] %vm173, %v2879
    %2896 = vst.msk [vmem:[%s10 + $0x58] sm:$0xff] %vm173, %v2880
    %2897 = vst.msk [vmem:[%s10 + $0x60] sm:$0xff] %vm173, %v2881
    %2898 = vst.msk [vmem:[%s10 + $0x68] sm:$0xff] %vm173, %v2882
    %2899 = vst.msk [vmem:[%s10 + $0x70] sm:$0xff] %vm173, %v2883
    %2900 = vst.msk [vmem:[%s10 + $0x78] sm:$0xff] %vm173, %v2884
    // Predicated region
    $region58: #{tpu_custom_call.1} parent=1 // pred_check
      _
    $region59: #{tpu_custom_call.1} parent=1 // pred_check_branch
      %2902 = sbr.rel (0) target = $region61
    $region60: #{tpu_custom_call.1} parent=1 // pred_region
      _
    $region61: #{tpu_custom_call.1} parent=1 // pred_fallthru
      _
    // Predicated region
    $region62: #{tpu_custom_call.1} parent=1 // pred_check
      _
    $region63: #{tpu_custom_call.1} parent=1 // pred_check_branch
      %2904 = sbr.rel (0) target = $region65
    $region64: #{tpu_custom_call.1} parent=1 // pred_region
      _
    $region65: #{tpu_custom_call.1} parent=1 // pred_fallthru
      _
    %2905 = vsyncpa [#allocation3], 1
    %2906 = vsyncpa [#allocation5], 1
    %2907 = vsyncpa [#allocation8], 1

</llo_original>
